<compile_context>
chip_gen: v7x
topology: tpu7x:2x2x1
jax: 0.10.0
libtpu: 0.0.40
codegen_flags: <defaults>
</compile_context>

<pallas_src>
import jax
import jax.numpy as jnp
from jax.experimental import pallas as pl
from jax.experimental.pallas import tpu as pltpu

# Model dims (from the PyTorch module __init__)
IMG_FEAT_DIM = 1024      # convnext_base pooled feature dim
TXT_FEAT_DIM = 768       # distilbert hidden size (CLS token)
IMG_EMB_DIM = 512
TXT_EMB_DIM = 512
CAT_EMB_DIM = 128
HIDDEN_DIM = 256
NUM_CATEGORIES = 2
NUM_SUBCATEGORIES = 14
FUSED_DIM = IMG_EMB_DIM + TXT_EMB_DIM + CAT_EMB_DIM + CAT_EMB_DIM  # 1280

# Batch tile.  After weight composition the kernel is HBM-bound on v6e, so a
# large tile amortizes the ~0.35 us per-grid-step overhead; VMEM at tile 512
# (double-buffered bf16 activations + f32 intermediates + <1 MiB of resident
# weights) stays well inside the 16/32 MiB scoped defaults of v5e/v6e/v7x.
MAX_TILE_B = 512


def _round_up(x, m):
    return ((x + m - 1) // m) * m


def _choose_tile_b(B, max_tile_b):
    # Multiples of 16 (native bf16 sublane tile) -- avoids worst-case small
    # batch layouts and under-filled MXU M.
    b16 = _round_up(max(B, 1), 16)
    tile = min(max_tile_b, b16)
    if B > 128 and b16 <= max_tile_b:
        # Prefer >= 2 grid steps for mid-size batches so the "parallel" batch
        # axis can be sharded across both TensorCores on v7x.
        tile = _round_up(pl.cdiv(b16, 2), 16)
    return tile


def predictor_kernel(img_ref, txt_ref, ids_ref,
                     wc_img_ref, wc_txt_ref,
                     cat_tab_ref, sub_tab_ref,
                     b1_ref, w2_ref, b2_ref,
                     out_ref):
    f32 = jnp.float32
    tile_b = img_ref.shape[0]

    # Composed projections: img@(Wi@W1_img) + txt@(Wt@W1_txt)  (bf16 MXU, f32 acc)
    h = jnp.dot(img_ref[...], wc_img_ref[...], preferred_element_type=f32)
    h = h + jnp.dot(txt_ref[...], wc_txt_ref[...], preferred_element_type=f32)

    # Embedding lookups, pre-folded into the 256-wide hidden space.
    # Small-table selects on the VPU; the lane broadcast of the ids is hoisted
    # out of the unrolled loops (JAX does not CSE broadcast_in_dim).
    ids = ids_ref[...]                                           # (tile_b, 2) int32
    cat_b = jnp.broadcast_to(ids[:, 0:1], (tile_b, HIDDEN_DIM))
    sub_b = jnp.broadcast_to(ids[:, 1:2], (tile_b, HIDDEN_DIM))

    # TODO(synk): out-of-range ids select an all-zero row instead of raising
    #             like nn.Embedding; padded batch rows use id 0 (always valid).
    cat_h = jnp.zeros((tile_b, HIDDEN_DIM), f32)
    for k in range(NUM_CATEGORIES):
        cat_h = jnp.where(cat_b == k, cat_tab_ref[k:k + 1, :], cat_h)
    sub_h = jnp.zeros((tile_b, HIDDEN_DIM), f32)
    for k in range(NUM_SUBCATEGORIES):
        sub_h = jnp.where(sub_b == k, sub_tab_ref[k:k + 1, :], sub_h)

    # Folded bias + ReLU (Dropout = identity at inference).
    h = jnp.maximum(h + cat_h + sub_h + b1_ref[...], 0.0)

    # Final (256 -> 1) head: VPU multiply + lane reduce (MXU with N=1 is wasteful).
    out_ref[...] = jnp.sum(h * w2_ref[...], axis=-1, keepdims=True) + b2_ref[0, 0]


def init_params(key):
    ks = jax.random.split(key, 8)

    def lin(k, fan_in, fan_out):
        # PyTorch nn.Linear default init: U(-1/sqrt(fan_in), 1/sqrt(fan_in))
        bound = 1.0 / jnp.sqrt(fan_in)
        kw, kb = jax.random.split(k)
        w = jax.random.uniform(kw, (fan_in, fan_out), jnp.float32, -bound, bound)
        b = jax.random.uniform(kb, (1, fan_out), jnp.float32, -bound, bound)
        return w, b

    wi, bi = lin(ks[0], IMG_FEAT_DIM, IMG_EMB_DIM)
    wt, bt = lin(ks[1], TXT_FEAT_DIM, TXT_EMB_DIM)
    w1, b1 = lin(ks[2], FUSED_DIM, HIDDEN_DIM)
    w2, b2 = lin(ks[3], HIDDEN_DIM, 1)
    cat_tab = jax.random.normal(ks[4], (NUM_CATEGORIES, CAT_EMB_DIM), jnp.float32)
    sub_tab = jax.random.normal(ks[5], (NUM_SUBCATEGORIES, CAT_EMB_DIM), jnp.float32)
    return dict(wi=wi, bi=bi, wt=wt, bt=bt,
                cat_tab=cat_tab, sub_tab=sub_tab,
                w1=w1, b1=b1, w2=w2, b2=b2)


def prepare_kernel_params(p):
    """Compose the back-to-back linears and fold the embedding tables.

    All composition is done in f32 (highest precision), then the big composed
    matrices are cast to bf16 exactly once.  Valid because the module applies
    the fusion MLP directly to the (un-activated) projection outputs.
    """
    f32 = jnp.float32
    bf = jnp.bfloat16
    hp = jax.lax.Precision.HIGHEST

    w1 = p["w1"].astype(f32)
    o0 = IMG_EMB_DIM
    o1 = o0 + TXT_EMB_DIM
    o2 = o1 + CAT_EMB_DIM
    w1_img, w1_txt, w1_cat, w1_sub = w1[:o0], w1[o0:o1], w1[o1:o2], w1[o2:]

    wc_img = jnp.dot(p["wi"].astype(f32), w1_img, precision=hp).astype(bf)   # (1024,256)
    wc_txt = jnp.dot(p["wt"].astype(f32), w1_txt, precision=hp).astype(bf)   # (768,256)
    b1_fused = (p["b1"].astype(f32)
                + jnp.dot(p["bi"].astype(f32), w1_img, precision=hp)
                + jnp.dot(p["bt"].astype(f32), w1_txt, precision=hp))        # (1,256)

    # lookup-then-linear == linear-of-lookup: fold tables into hidden space.
    cat_tab_h = jnp.dot(p["cat_tab"].astype(f32), w1_cat, precision=hp)      # (2,256)
    sub_tab_h = jnp.dot(p["sub_tab"].astype(f32), w1_sub, precision=hp)      # (14,256)

    return dict(
        wc_img=wc_img, wc_txt=wc_txt, b1=b1_fused,
        cat_tab=cat_tab_h, sub_tab=sub_tab_h,
        w2=p["w2"].astype(f32).reshape(1, HIDDEN_DIM),
        b2=p["b2"].astype(f32).reshape(1, 1),
    )


def price_predictor(img_feat, text_cls, category_ids, subcategory_ids, kparams,
                    max_tile_b=MAX_TILE_B):
    """Forward pass of the fusion head.

    img_feat:  (B, 1024) float -- output of the convnext_base image encoder
    text_cls:  (B, 768)  float -- DistilBERT last_hidden_state[:, 0]
    category_ids, subcategory_ids: (B,) int32
    """
    # TODO(synk): the pretrained ConvNeXt image encoder is not reimplemented;
    #             the kernel consumes its pooled 1024-d features directly.
    # TODO(synk): the pretrained DistilBERT text encoder is not reimplemented;
    #             the kernel consumes the 768-d CLS-token features directly.
    B = img_feat.shape[0]
    tile_b = _choose_tile_b(B, max_tile_b)
    b_pad = _round_up(B, tile_b)
    pad = b_pad - B

    img = jnp.pad(img_feat.astype(jnp.bfloat16), ((0, pad), (0, 0)))
    txt = jnp.pad(text_cls.astype(jnp.bfloat16), ((0, pad), (0, 0)))
    # Merge both id vectors into one (b_pad, 2) block: a single small DMA per
    # grid step instead of two lane-width-1 blocks.
    ids = jnp.stack([category_ids.astype(jnp.int32),
                     subcategory_ids.astype(jnp.int32)], axis=1)
    ids = jnp.pad(ids, ((0, pad), (0, 0)))

    grid = (pl.cdiv(b_pad, tile_b),)

    def act_spec(d):
        # Batch-tiled activations: DMA for tile i+1 overlaps compute of tile i.
        return pl.BlockSpec((tile_b, d), lambda i: (i, 0))

    def res_spec(shape):
        # Constant index map -> block stays VMEM-resident across grid steps.
        return pl.BlockSpec(shape, lambda i: (0, 0))

    in_specs = [
        act_spec(IMG_FEAT_DIM), act_spec(TXT_FEAT_DIM), act_spec(2),
        res_spec((IMG_FEAT_DIM, HIDDEN_DIM)),                    # Wc_img (bf16)
        res_spec((TXT_FEAT_DIM, HIDDEN_DIM)),                    # Wc_txt (bf16)
        res_spec((NUM_CATEGORIES, HIDDEN_DIM)),                  # cat table in hidden space (f32)
        res_spec((NUM_SUBCATEGORIES, HIDDEN_DIM)),               # sub table in hidden space (f32)
        res_spec((1, HIDDEN_DIM)),                               # folded b1 (f32)
        res_spec((1, HIDDEN_DIM)),                               # w2 row (f32)
        pl.BlockSpec(memory_space=pltpu.MemorySpace.SMEM),       # b2 scalar
    ]

    out = pl.pallas_call(
        predictor_kernel,
        out_shape=jax.ShapeDtypeStruct((b_pad, 1), jnp.float32),
        grid=grid,
        in_specs=in_specs,
        out_specs=pl.BlockSpec((tile_b, 1), lambda i: (i, 0)),
        compiler_params=pltpu.CompilerParams(
            dimension_semantics=("parallel",),     # shards batch tiles across TCs on v7x
            vmem_limit_bytes=32 * 1024 * 1024,     # explicit headroom for tile_b=512
        ),
    )(img, txt, ids,
      kparams["wc_img"], kparams["wc_txt"],
      kparams["cat_tab"], kparams["sub_tab"],
      kparams["b1"], kparams["w2"], kparams["b2"])
    return out[:B]


def reference_forward(img, txt, cat_ids, sub_ids, p):
    """Pure-JAX f32 reference with the original (un-composed) PyTorch math."""
    hp = jax.lax.Precision.HIGHEST
    img_emb = jnp.dot(img, p["wi"], precision=hp) + p["bi"]
    txt_emb = jnp.dot(txt, p["wt"], precision=hp) + p["bt"]
    cat_emb = p["cat_tab"][cat_ids]
    sub_emb = p["sub_tab"][sub_ids]
    fused = jnp.concatenate([img_emb, txt_emb, cat_emb, sub_emb], axis=1)
    h = jnp.maximum(jnp.dot(fused, p["w1"], precision=hp) + p["b1"], 0.0)
    return jnp.dot(h, p["w2"], precision=hp) + p["b2"]


if __name__ == "__main__":
    key = jax.random.PRNGKey(0)
    k_params, k_img, k_txt, k_cat, k_sub = jax.random.split(key, 5)

    params = init_params(k_params)
    kparams = prepare_kernel_params(params)

    # Small-shape check (batch=2), exercises batch padding to the 16-row tile.
    B = 2
    img_feat = jax.random.normal(k_img, (B, IMG_FEAT_DIM), jnp.float32)
    text_cls = jax.random.normal(k_txt, (B, TXT_FEAT_DIM), jnp.float32)
    category_ids = jax.random.randint(k_cat, (B,), 0, NUM_CATEGORIES, jnp.int32)
    subcategory_ids = jax.random.randint(k_sub, (B,), 0, NUM_SUBCATEGORIES, jnp.int32)

    price = price_predictor(img_feat, text_cls, category_ids, subcategory_ids, kparams)
    price = jax.block_until_ready(price)
    assert price.shape == (B, 1) and price.dtype == jnp.float32
    ref = reference_forward(img_feat, text_cls, category_ids, subcategory_ids, params)
    assert jnp.allclose(price, ref, atol=1e-2, rtol=1e-2), (price, ref)

    # Multi-tile check (grid > 1) with a small forced tile size.
    B2 = 40
    k2 = jax.random.split(jax.random.PRNGKey(1), 4)
    img2 = jax.random.normal(k2[0], (B2, IMG_FEAT_DIM), jnp.float32)
    txt2 = jax.random.normal(k2[1], (B2, TXT_FEAT_DIM), jnp.float32)
    cat2 = jax.random.randint(k2[2], (B2,), 0, NUM_CATEGORIES, jnp.int32)
    sub2 = jax.random.randint(k2[3], (B2,), 0, NUM_SUBCATEGORIES, jnp.int32)
    price2 = price_predictor(img2, txt2, cat2, sub2, kparams, max_tile_b=16)
    price2 = jax.block_until_ready(price2)
    ref2 = reference_forward(img2, txt2, cat2, sub2, params)
    assert price2.shape == (B2, 1)
    assert jnp.allclose(price2, ref2, atol=1e-2, rtol=1e-2), (price2, ref2)

    print("KERNEL_OK")
</pallas_src>

<mosaic_0001>
module attributes {stable_mosaic.version = 11 : i64} {
  func.func @predictor_kernel(%arg0: i32, %arg1: memref<16x1024xbf16, #tpu.memory_space<vmem>>, %arg2: memref<16x768xbf16, #tpu.memory_space<vmem>>, %arg3: memref<16x2xi32, #tpu.memory_space<vmem>>, %arg4: memref<1024x256xbf16, #tpu.memory_space<vmem>>, %arg5: memref<768x256xbf16, #tpu.memory_space<vmem>>, %arg6: memref<2x256xf32, #tpu.memory_space<vmem>>, %arg7: memref<14x256xf32, #tpu.memory_space<vmem>>, %arg8: memref<1x256xf32, #tpu.memory_space<vmem>>, %arg9: memref<1x256xf32, #tpu.memory_space<vmem>>, %arg10: memref<1x1xf32, #tpu.memory_space<smem>>, %arg11: memref<16x1xf32, #tpu.memory_space<vmem>>) attributes {dimension_semantics = [#tpu.dimension_semantics<parallel>], iteration_bounds = array<i64: 1>, scalar_prefetch = 0 : i64, scratch_operands = 0 : i64, tpu.core_type = #tpu.core_type<tc>, window_params = [{transform_indices = @transform_0, window_bounds = array<i64: 16, 1024>}, {transform_indices = @transform_1, window_bounds = array<i64: 16, 768>}, {transform_indices = @transform_2, window_bounds = array<i64: 16, 2>}, {pipeline_mode = #tpu.pipeline_mode<synchronous>, transform_indices = @transform_3, window_bounds = array<i64: 1024, 256>}, {pipeline_mode = #tpu.pipeline_mode<synchronous>, transform_indices = @transform_4, window_bounds = array<i64: 768, 256>}, {pipeline_mode = #tpu.pipeline_mode<synchronous>, transform_indices = @transform_5, window_bounds = array<i64: 2, 256>}, {pipeline_mode = #tpu.pipeline_mode<synchronous>, transform_indices = @transform_6, window_bounds = array<i64: 14, 256>}, {pipeline_mode = #tpu.pipeline_mode<synchronous>, transform_indices = @transform_7, window_bounds = array<i64: 1, 256>}, {pipeline_mode = #tpu.pipeline_mode<synchronous>, transform_indices = @transform_8, window_bounds = array<i64: 1, 256>}, {transform_indices = @transform_9, window_bounds = array<i64: 1, 1>}, {transform_indices = @transform_10, window_bounds = array<i64: 16, 1>}]} {
    %c0 = arith.constant 0 : index
    %c0_0 = arith.constant 0 : index
    %0 = vector.load %arg1[%c0, %c0_0] : memref<16x1024xbf16, #tpu.memory_space<vmem>>, vector<16x1024xbf16>
    %c0_1 = arith.constant 0 : index
    %c0_2 = arith.constant 0 : index
    %1 = vector.load %arg4[%c0_1, %c0_2] : memref<1024x256xbf16, #tpu.memory_space<vmem>>, vector<1024x256xbf16>
    %cst = arith.constant dense<0.000000e+00> : vector<16x256xf32>
    %2 = tpu.matmul %0, %1, %cst {dimension_numbers = #tpu.dot_dimension_numbers<[1], [0], [0], [1], [0, 0, 1, 1], [], []>} : vector<16x1024xbf16>, vector<1024x256xbf16>, vector<16x256xf32> -> vector<16x256xf32>
    %c0_3 = arith.constant 0 : index
    %c0_4 = arith.constant 0 : index
    %3 = vector.load %arg2[%c0_3, %c0_4] : memref<16x768xbf16, #tpu.memory_space<vmem>>, vector<16x768xbf16>
    %c0_5 = arith.constant 0 : index
    %c0_6 = arith.constant 0 : index
    %4 = vector.load %arg5[%c0_5, %c0_6] : memref<768x256xbf16, #tpu.memory_space<vmem>>, vector<768x256xbf16>
    %cst_7 = arith.constant dense<0.000000e+00> : vector<16x256xf32>
    %5 = tpu.matmul %3, %4, %cst_7 {dimension_numbers = #tpu.dot_dimension_numbers<[1], [0], [0], [1], [0, 0, 1, 1], [], []>} : vector<16x768xbf16>, vector<768x256xbf16>, vector<16x256xf32> -> vector<16x256xf32>
    %6 = arith.addf %2, %5 : vector<16x256xf32>
    %c0_8 = arith.constant 0 : index
    %c0_9 = arith.constant 0 : index
    %7 = vector.load %arg3[%c0_8, %c0_9] : memref<16x2xi32, #tpu.memory_space<vmem>>, vector<16x2xi32>
    %8 = vector.extract_strided_slice %7 {offsets = [0, 0], sizes = [16, 1], strides = [1, 1]} : vector<16x2xi32> to vector<16x1xi32>
    %9 = vector.shape_cast %8 : vector<16x1xi32> to vector<16x1xi32>
    %10 = vector.broadcast %9 : vector<16x1xi32> to vector<16x256xi32>
    %11 = vector.extract_strided_slice %7 {offsets = [0, 1], sizes = [16, 1], strides = [1, 1]} : vector<16x2xi32> to vector<16x1xi32>
    %12 = vector.shape_cast %11 : vector<16x1xi32> to vector<16x1xi32>
    %13 = vector.broadcast %12 : vector<16x1xi32> to vector<16x256xi32>
    %cst_10 = arith.constant 0.000000e+00 : f32
    %14 = vector.broadcast %cst_10 : f32 to vector<16x256xf32>
    %c0_i32 = arith.constant 0 : i32
    %15 = vector.broadcast %c0_i32 : i32 to vector<16x256xi32>
    %16 = arith.cmpi eq, %10, %15 : vector<16x256xi32>
    %c0_11 = arith.constant 0 : index
    %c0_12 = arith.constant 0 : index
    %17 = vector.load %arg6[%c0_11, %c0_12] : memref<2x256xf32, #tpu.memory_space<vmem>>, vector<1x256xf32>
    %18 = vector.shape_cast %17 : vector<1x256xf32> to vector<1x256xf32>
    %19 = vector.broadcast %18 : vector<1x256xf32> to vector<16x256xf32>
    %20 = arith.select %16, %19, %14 : vector<16x256xi1>, vector<16x256xf32>
    %c1_i32 = arith.constant 1 : i32
    %21 = vector.broadcast %c1_i32 : i32 to vector<16x256xi32>
    %22 = arith.cmpi eq, %10, %21 : vector<16x256xi32>
    %c1 = arith.constant 1 : index
    %c0_13 = arith.constant 0 : index
    %23 = vector.load %arg6[%c1, %c0_13] : memref<2x256xf32, #tpu.memory_space<vmem>>, vector<1x256xf32>
    %24 = vector.shape_cast %23 : vector<1x256xf32> to vector<1x256xf32>
    %25 = vector.broadcast %24 : vector<1x256xf32> to vector<16x256xf32>
    %26 = arith.select %22, %25, %20 : vector<16x256xi1>, vector<16x256xf32>
    %cst_14 = arith.constant 0.000000e+00 : f32
    %27 = vector.broadcast %cst_14 : f32 to vector<16x256xf32>
    %c0_i32_15 = arith.constant 0 : i32
    %28 = vector.broadcast %c0_i32_15 : i32 to vector<16x256xi32>
    %29 = arith.cmpi eq, %13, %28 : vector<16x256xi32>
    %c0_16 = arith.constant 0 : index
    %c0_17 = arith.constant 0 : index
    %30 = vector.load %arg7[%c0_16, %c0_17] : memref<14x256xf32, #tpu.memory_space<vmem>>, vector<1x256xf32>
    %31 = vector.shape_cast %30 : vector<1x256xf32> to vector<1x256xf32>
    %32 = vector.broadcast %31 : vector<1x256xf32> to vector<16x256xf32>
    %33 = arith.select %29, %32, %27 : vector<16x256xi1>, vector<16x256xf32>
    %c1_i32_18 = arith.constant 1 : i32
    %34 = vector.broadcast %c1_i32_18 : i32 to vector<16x256xi32>
    %35 = arith.cmpi eq, %13, %34 : vector<16x256xi32>
    %c1_19 = arith.constant 1 : index
    %c0_20 = arith.constant 0 : index
    %36 = vector.load %arg7[%c1_19, %c0_20] : memref<14x256xf32, #tpu.memory_space<vmem>>, vector<1x256xf32>
    %37 = vector.shape_cast %36 : vector<1x256xf32> to vector<1x256xf32>
    %38 = vector.broadcast %37 : vector<1x256xf32> to vector<16x256xf32>
    %39 = arith.select %35, %38, %33 : vector<16x256xi1>, vector<16x256xf32>
    %c2_i32 = arith.constant 2 : i32
    %40 = vector.broadcast %c2_i32 : i32 to vector<16x256xi32>
    %41 = arith.cmpi eq, %13, %40 : vector<16x256xi32>
    %c2 = arith.constant 2 : index
    %c0_21 = arith.constant 0 : index
    %42 = vector.load %arg7[%c2, %c0_21] : memref<14x256xf32, #tpu.memory_space<vmem>>, vector<1x256xf32>
    %43 = vector.shape_cast %42 : vector<1x256xf32> to vector<1x256xf32>
    %44 = vector.broadcast %43 : vector<1x256xf32> to vector<16x256xf32>
    %45 = arith.select %41, %44, %39 : vector<16x256xi1>, vector<16x256xf32>
    %c3_i32 = arith.constant 3 : i32
    %46 = vector.broadcast %c3_i32 : i32 to vector<16x256xi32>
    %47 = arith.cmpi eq, %13, %46 : vector<16x256xi32>
    %c3 = arith.constant 3 : index
    %c0_22 = arith.constant 0 : index
    %48 = vector.load %arg7[%c3, %c0_22] : memref<14x256xf32, #tpu.memory_space<vmem>>, vector<1x256xf32>
    %49 = vector.shape_cast %48 : vector<1x256xf32> to vector<1x256xf32>
    %50 = vector.broadcast %49 : vector<1x256xf32> to vector<16x256xf32>
    %51 = arith.select %47, %50, %45 : vector<16x256xi1>, vector<16x256xf32>
    %c4_i32 = arith.constant 4 : i32
    %52 = vector.broadcast %c4_i32 : i32 to vector<16x256xi32>
    %53 = arith.cmpi eq, %13, %52 : vector<16x256xi32>
    %c4 = arith.constant 4 : index
    %c0_23 = arith.constant 0 : index
    %54 = vector.load %arg7[%c4, %c0_23] : memref<14x256xf32, #tpu.memory_space<vmem>>, vector<1x256xf32>
    %55 = vector.shape_cast %54 : vector<1x256xf32> to vector<1x256xf32>
    %56 = vector.broadcast %55 : vector<1x256xf32> to vector<16x256xf32>
    %57 = arith.select %53, %56, %51 : vector<16x256xi1>, vector<16x256xf32>
    %c5_i32 = arith.constant 5 : i32
    %58 = vector.broadcast %c5_i32 : i32 to vector<16x256xi32>
    %59 = arith.cmpi eq, %13, %58 : vector<16x256xi32>
    %c5 = arith.constant 5 : index
    %c0_24 = arith.constant 0 : index
    %60 = vector.load %arg7[%c5, %c0_24] : memref<14x256xf32, #tpu.memory_space<vmem>>, vector<1x256xf32>
    %61 = vector.shape_cast %60 : vector<1x256xf32> to vector<1x256xf32>
    %62 = vector.broadcast %61 : vector<1x256xf32> to vector<16x256xf32>
    %63 = arith.select %59, %62, %57 : vector<16x256xi1>, vector<16x256xf32>
    %c6_i32 = arith.constant 6 : i32
    %64 = vector.broadcast %c6_i32 : i32 to vector<16x256xi32>
    %65 = arith.cmpi eq, %13, %64 : vector<16x256xi32>
    %c6 = arith.constant 6 : index
    %c0_25 = arith.constant 0 : index
    %66 = vector.load %arg7[%c6, %c0_25] : memref<14x256xf32, #tpu.memory_space<vmem>>, vector<1x256xf32>
    %67 = vector.shape_cast %66 : vector<1x256xf32> to vector<1x256xf32>
    %68 = vector.broadcast %67 : vector<1x256xf32> to vector<16x256xf32>
    %69 = arith.select %65, %68, %63 : vector<16x256xi1>, vector<16x256xf32>
    %c7_i32 = arith.constant 7 : i32
    %70 = vector.broadcast %c7_i32 : i32 to vector<16x256xi32>
    %71 = arith.cmpi eq, %13, %70 : vector<16x256xi32>
    %c7 = arith.constant 7 : index
    %c0_26 = arith.constant 0 : index
    %72 = vector.load %arg7[%c7, %c0_26] : memref<14x256xf32, #tpu.memory_space<vmem>>, vector<1x256xf32>
    %73 = vector.shape_cast %72 : vector<1x256xf32> to vector<1x256xf32>
    %74 = vector.broadcast %73 : vector<1x256xf32> to vector<16x256xf32>
    %75 = arith.select %71, %74, %69 : vector<16x256xi1>, vector<16x256xf32>
    %c8_i32 = arith.constant 8 : i32
    %76 = vector.broadcast %c8_i32 : i32 to vector<16x256xi32>
    %77 = arith.cmpi eq, %13, %76 : vector<16x256xi32>
    %c8 = arith.constant 8 : index
    %c0_27 = arith.constant 0 : index
    %78 = vector.load %arg7[%c8, %c0_27] : memref<14x256xf32, #tpu.memory_space<vmem>>, vector<1x256xf32>
    %79 = vector.shape_cast %78 : vector<1x256xf32> to vector<1x256xf32>
    %80 = vector.broadcast %79 : vector<1x256xf32> to vector<16x256xf32>
    %81 = arith.select %77, %80, %75 : vector<16x256xi1>, vector<16x256xf32>
    %c9_i32 = arith.constant 9 : i32
    %82 = vector.broadcast %c9_i32 : i32 to vector<16x256xi32>
    %83 = arith.cmpi eq, %13, %82 : vector<16x256xi32>
    %c9 = arith.constant 9 : index
    %c0_28 = arith.constant 0 : index
    %84 = vector.load %arg7[%c9, %c0_28] : memref<14x256xf32, #tpu.memory_space<vmem>>, vector<1x256xf32>
    %85 = vector.shape_cast %84 : vector<1x256xf32> to vector<1x256xf32>
    %86 = vector.broadcast %85 : vector<1x256xf32> to vector<16x256xf32>
    %87 = arith.select %83, %86, %81 : vector<16x256xi1>, vector<16x256xf32>
    %c10_i32 = arith.constant 10 : i32
    %88 = vector.broadcast %c10_i32 : i32 to vector<16x256xi32>
    %89 = arith.cmpi eq, %13, %88 : vector<16x256xi32>
    %c10 = arith.constant 10 : index
    %c0_29 = arith.constant 0 : index
    %90 = vector.load %arg7[%c10, %c0_29] : memref<14x256xf32, #tpu.memory_space<vmem>>, vector<1x256xf32>
    %91 = vector.shape_cast %90 : vector<1x256xf32> to vector<1x256xf32>
    %92 = vector.broadcast %91 : vector<1x256xf32> to vector<16x256xf32>
    %93 = arith.select %89, %92, %87 : vector<16x256xi1>, vector<16x256xf32>
    %c11_i32 = arith.constant 11 : i32
    %94 = vector.broadcast %c11_i32 : i32 to vector<16x256xi32>
    %95 = arith.cmpi eq, %13, %94 : vector<16x256xi32>
    %c11 = arith.constant 11 : index
    %c0_30 = arith.constant 0 : index
    %96 = vector.load %arg7[%c11, %c0_30] : memref<14x256xf32, #tpu.memory_space<vmem>>, vector<1x256xf32>
    %97 = vector.shape_cast %96 : vector<1x256xf32> to vector<1x256xf32>
    %98 = vector.broadcast %97 : vector<1x256xf32> to vector<16x256xf32>
    %99 = arith.select %95, %98, %93 : vector<16x256xi1>, vector<16x256xf32>
    %c12_i32 = arith.constant 12 : i32
    %100 = vector.broadcast %c12_i32 : i32 to vector<16x256xi32>
    %101 = arith.cmpi eq, %13, %100 : vector<16x256xi32>
    %c12 = arith.constant 12 : index
    %c0_31 = arith.constant 0 : index
    %102 = vector.load %arg7[%c12, %c0_31] : memref<14x256xf32, #tpu.memory_space<vmem>>, vector<1x256xf32>
    %103 = vector.shape_cast %102 : vector<1x256xf32> to vector<1x256xf32>
    %104 = vector.broadcast %103 : vector<1x256xf32> to vector<16x256xf32>
    %105 = arith.select %101, %104, %99 : vector<16x256xi1>, vector<16x256xf32>
    %c13_i32 = arith.constant 13 : i32
    %106 = vector.broadcast %c13_i32 : i32 to vector<16x256xi32>
    %107 = arith.cmpi eq, %13, %106 : vector<16x256xi32>
    %c13 = arith.constant 13 : index
    %c0_32 = arith.constant 0 : index
    %108 = vector.load %arg7[%c13, %c0_32] : memref<14x256xf32, #tpu.memory_space<vmem>>, vector<1x256xf32>
    %109 = vector.shape_cast %108 : vector<1x256xf32> to vector<1x256xf32>
    %110 = vector.broadcast %109 : vector<1x256xf32> to vector<16x256xf32>
    %111 = arith.select %107, %110, %105 : vector<16x256xi1>, vector<16x256xf32>
    %112 = arith.addf %6, %26 : vector<16x256xf32>
    %113 = arith.addf %112, %111 : vector<16x256xf32>
    %c0_33 = arith.constant 0 : index
    %c0_34 = arith.constant 0 : index
    %114 = vector.load %arg8[%c0_33, %c0_34] : memref<1x256xf32, #tpu.memory_space<vmem>>, vector<1x256xf32>
    %115 = vector.broadcast %114 : vector<1x256xf32> to vector<16x256xf32>
    %116 = arith.addf %113, %115 : vector<16x256xf32>
    %cst_35 = arith.constant 0.000000e+00 : f32
    %117 = vector.broadcast %cst_35 : f32 to vector<16x256xf32>
    %118 = arith.maximumf %116, %117 : vector<16x256xf32>
    %c0_36 = arith.constant 0 : index
    %c0_37 = arith.constant 0 : index
    %119 = vector.load %arg9[%c0_36, %c0_37] : memref<1x256xf32, #tpu.memory_space<vmem>>, vector<1x256xf32>
    %120 = vector.broadcast %119 : vector<1x256xf32> to vector<16x256xf32>
    %121 = arith.mulf %118, %120 : vector<16x256xf32>
    %cst_38 = arith.constant dense<0.000000e+00> : vector<16xf32>
    %122 = vector.multi_reduction <add>, %121, %cst_38 [1] : vector<16x256xf32> to vector<16xf32>
    %123 = vector.shape_cast %122 : vector<16xf32> to vector<16x1xf32>
    %c0_39 = arith.constant 0 : index
    %c0_40 = arith.constant 0 : index
    %124 = memref.load %arg10[%c0_39, %c0_40] : memref<1x1xf32, #tpu.memory_space<smem>>
    %125 = vector.broadcast %124 : f32 to vector<16x1xf32>
    %126 = arith.addf %123, %125 : vector<16x1xf32>
    %c0_41 = arith.constant 0 : index
    %c0_42 = arith.constant 0 : index
    %127 = vector.load %arg11[%c0_41, %c0_42] : memref<16x1xf32, #tpu.memory_space<vmem>>, vector<16x1xf32>
    tpu.vector_store %arg11[%c0_41, %c0_42], %126 {strides = array<i32>} : memref<16x1xf32, #tpu.memory_space<vmem>>, vector<16x1xf32>,
    return
  }
  func.func @transform_0(%arg0: i32) -> (i32, i32) {
    %c0_i32 = arith.constant 0 : i32
    %c0_i32_0 = arith.constant 0 : i32
    return %arg0, %c0_i32 : i32, i32
  }
  func.func @transform_1(%arg0: i32) -> (i32, i32) {
    %c0_i32 = arith.constant 0 : i32
    %c0_i32_0 = arith.constant 0 : i32
    return %arg0, %c0_i32 : i32, i32
  }
  func.func @transform_2(%arg0: i32) -> (i32, i32) {
    %c0_i32 = arith.constant 0 : i32
    %c0_i32_0 = arith.constant 0 : i32
    return %arg0, %c0_i32 : i32, i32
  }
  func.func @transform_3(%arg0: i32) -> (i32, i32) {
    %c0_i32 = arith.constant 0 : i32
    %c0_i32_0 = arith.constant 0 : i32
    %c0_i32_1 = arith.constant 0 : i32
    return %c0_i32, %c0_i32_0 : i32, i32
  }
  func.func @transform_4(%arg0: i32) -> (i32, i32) {
    %c0_i32 = arith.constant 0 : i32
    %c0_i32_0 = arith.constant 0 : i32
    %c0_i32_1 = arith.constant 0 : i32
    return %c0_i32, %c0_i32_0 : i32, i32
  }
  func.func @transform_5(%arg0: i32) -> (i32, i32) {
    %c0_i32 = arith.constant 0 : i32
    %c0_i32_0 = arith.constant 0 : i32
    %c0_i32_1 = arith.constant 0 : i32
    return %c0_i32, %c0_i32_0 : i32, i32
  }
  func.func @transform_6(%arg0: i32) -> (i32, i32) {
    %c0_i32 = arith.constant 0 : i32
    %c0_i32_0 = arith.constant 0 : i32
    %c0_i32_1 = arith.constant 0 : i32
    return %c0_i32, %c0_i32_0 : i32, i32
  }
  func.func @transform_7(%arg0: i32) -> (i32, i32) {
    %c0_i32 = arith.constant 0 : i32
    %c0_i32_0 = arith.constant 0 : i32
    %c0_i32_1 = arith.constant 0 : i32
    return %c0_i32, %c0_i32_0 : i32, i32
  }
  func.func @transform_8(%arg0: i32) -> (i32, i32) {
    %c0_i32 = arith.constant 0 : i32
    %c0_i32_0 = arith.constant 0 : i32
    %c0_i32_1 = arith.constant 0 : i32
    return %c0_i32, %c0_i32_0 : i32, i32
  }
  func.func @transform_9(%arg0: i32) -> (i32, i32) {
    %c0_i32 = arith.constant 0 : i32
    %c0_i32_0 = arith.constant 0 : i32
    %c0_i32_1 = arith.constant 0 : i32
    return %c0_i32, %c0_i32_0 : i32, i32
  }
  func.func @transform_10(%arg0: i32) -> (i32, i32) {
    %c0_i32 = arith.constant 0 : i32
    %c0_i32_0 = arith.constant 0 : i32
    return %arg0, %c0_i32 : i32, i32
  }
}

</mosaic_0001>

<llo_original>
// kernel: tpu_custom_call.1
$region0: #{tpu_custom_call.1}
  #allocation0 [shape = 'u32[]', space=smem, size = 0x4, offset = 0x4, fixed_abs, tag = 'smem constant byte address 0x4 - core index']
  #allocation1 [shape = 'u32[144,128]{1,0:T(1,128)}', space=vmem, size = 0x12000, scoped, tag = 'internal scratch']
  #allocation2 [shape = 'f32[1,1]{1,0:T(1,128)S(6)}', space=smem, size = 0x200, scoped, tag = 'scoped memory for tpu_custom_call.1']
  %s0 = inlined_call_operand.hbm [shape: bf16[16,1024], index: 0, kind: input, shape index: {}]
  %s1 = inlined_call_operand.hbm [shape: bf16[16,768], index: 1, kind: input, shape index: {}]
  %s2 = inlined_call_operand.vmem [shape: s32[16,2], index: 2, kind: input, shape index: {}]
  %s3 = inlined_call_operand.hbm [shape: bf16[1024,256], index: 3, kind: input, shape index: {}]
  %s4 = inlined_call_operand.hbm [shape: bf16[768,256], index: 4, kind: input, shape index: {}]
  %s5 = inlined_call_operand.vmem [shape: f32[2,256], index: 5, kind: input, shape index: {}]
  %s6 = inlined_call_operand.vmem [shape: f32[14,256], index: 6, kind: input, shape index: {}]
  %s7 = inlined_call_operand.vmem [shape: f32[1,256], index: 7, kind: input, shape index: {}]
  %s8 = inlined_call_operand.vmem [shape: f32[1,256], index: 8, kind: input, shape index: {}]
  %s9 = inlined_call_operand.<no memory space> [shape: f32[1,1], index: 9, kind: input, shape index: {}]
  %s10 = inlined_call_operand.vmem [shape: f32[16,1], index: 10, kind: output, shape index: {}]
  %s11 = sld [smem:[#allocation0]]
  $region66: #{tpu_custom_call.1} parent=0
    _
  %s13 = ssub.s32 1, %s11
  %s14 = scalar_select 0, %s13, %s11
  %15 = sst [smem:[#allocation2]] %s9
  $region1: #{tpu_custom_call.1} parent=0
    #allocation3 [shape = 'u8[32768]{0}', space=vmem, size = 0x8000, scoped, tag = 'input window, operand 0, single buffered']
    #allocation4 [shape = 's32[1]{0}', space=sflag, size = 0x4, scoped, tag = 'scoped memory for tpu_custom_call.1']
    #allocation5 [shape = 'u8[24576]{0}', space=vmem, size = 0x6000, scoped, tag = 'input window, operand 1, single buffered']
    #allocation6 [shape = 's32[1]{0}', space=sflag, size = 0x4, scoped, tag = 'scoped memory for tpu_custom_call.1']
    #allocation7 [shape = 'u8[524288]{0}', space=vmem, size = 0x80000, scoped, tag = 'input window, operand 3, single buffered']
    #allocation8 [shape = 'u8[393216]{0}', space=vmem, size = 0x60000, scoped, tag = 'input window, operand 4, single buffered']
    #allocation9 [shape = 's32[1]{0}', space=sflag, size = 0x4, scoped, tag = 'scoped memory for tpu_custom_call.1']
    %16 = vsyncpa [#allocation4], 0
    %17 = vsyncpa [#allocation6], 0
    %18 = vsyncpa [#allocation9], 0
    // Predicated region
    $region2: #{tpu_custom_call.1} parent=1 // pred_check
      _
    $region3: #{tpu_custom_call.1} parent=1 // pred_check_branch
      %20 = sbr.rel (0) target = $region5
    $region4: #{tpu_custom_call.1} parent=1 // pred_region
      %s22 = ssub.s32 1024, 1024
      %23 = vsyncadd [#allocation4], %s22
      %s24 = sshll.u32 [#allocation3], 4
      %s25 = int_to_ptr.vmem [resolvable:$true] %s24
      %30 = dma.hbm_to_vmem [thread:$0]  %s0, 1024, %s25, [#allocation4], 512, 512, 32
    $region5: #{tpu_custom_call.1} parent=1 // pred_fallthru
      _
    // Predicated region
    $region6: #{tpu_custom_call.1} parent=1 // pred_check
      _
    $region7: #{tpu_custom_call.1} parent=1 // pred_check_branch
      %32 = sbr.rel (0) target = $region9
    $region8: #{tpu_custom_call.1} parent=1 // pred_region
      %s34 = ssub.s32 768, 768
      %35 = vsyncadd [#allocation6], %s34
      %s36 = sshll.u32 [#allocation5], 4
      %s37 = int_to_ptr.vmem [resolvable:$true] %s36
      %42 = dma.hbm_to_vmem [thread:$0]  %s1, 768, %s37, [#allocation6], 384, 384, 24
    $region9: #{tpu_custom_call.1} parent=1 // pred_fallthru
      _
    // Predicated region
    $region10: #{tpu_custom_call.1} parent=1 // pred_check
      _
    $region11: #{tpu_custom_call.1} parent=1 // pred_check_branch
      %44 = sbr.rel (0) target = $region13
    $region12: #{tpu_custom_call.1} parent=1 // pred_region
      _
    $region13: #{tpu_custom_call.1} parent=1 // pred_fallthru
      _
    // Predicated region
    $region14: #{tpu_custom_call.1} parent=1 // pred_check
      _
    $region15: #{tpu_custom_call.1} parent=1 // pred_check_branch
      %46 = sbr.rel (0) target = $region17
    $region16: #{tpu_custom_call.1} parent=1 // pred_region
      %s48 = ssub.s32 16384, 16384
      %49 = vsyncadd [#allocation6], %s48
      %s50 = sshll.u32 [#allocation7], 4
      %s51 = int_to_ptr.vmem [resolvable:$true] %s50
      %56 = dma.hbm_to_vmem [thread:$0]  %s3, 16384, %s51, [#allocation6], 128, 128, 8
    $region17: #{tpu_custom_call.1} parent=1 // pred_fallthru
      _
    // Predicated region
    $region18: #{tpu_custom_call.1} parent=1 // pred_check
      _
    $region19: #{tpu_custom_call.1} parent=1 // pred_check_branch
      %58 = sbr.rel (0) target = $region21
    $region20: #{tpu_custom_call.1} parent=1 // pred_region
      %s60 = ssub.s32 12288, 12288
      %61 = vsyncadd [#allocation9], %s60
      %s62 = sshll.u32 [#allocation8], 4
      %s63 = int_to_ptr.vmem [resolvable:$true] %s62
      %68 = dma.hbm_to_vmem [thread:$0]  %s4, 12288, %s63, [#allocation9], 128, 128, 8
    $region21: #{tpu_custom_call.1} parent=1 // pred_fallthru
      _
    // Predicated region
    $region22: #{tpu_custom_call.1} parent=1 // pred_check
      _
    $region23: #{tpu_custom_call.1} parent=1 // pred_check_branch
      %70 = sbr.rel (0) target = $region25
    $region24: #{tpu_custom_call.1} parent=1 // pred_region
      _
    $region25: #{tpu_custom_call.1} parent=1 // pred_fallthru
      _
    // Predicated region
    $region26: #{tpu_custom_call.1} parent=1 // pred_check
      _
    $region27: #{tpu_custom_call.1} parent=1 // pred_check_branch
      %72 = sbr.rel (0) target = $region29
    $region28: #{tpu_custom_call.1} parent=1 // pred_region
      _
    $region29: #{tpu_custom_call.1} parent=1 // pred_fallthru
      _
    // Predicated region
    $region30: #{tpu_custom_call.1} parent=1 // pred_check
      _
    $region31: #{tpu_custom_call.1} parent=1 // pred_check_branch
      %74 = sbr.rel (0) target = $region33
    $region32: #{tpu_custom_call.1} parent=1 // pred_region
      _
    $region33: #{tpu_custom_call.1} parent=1 // pred_fallthru
      _
    // Predicated region
    $region34: #{tpu_custom_call.1} parent=1 // pred_check
      _
    $region35: #{tpu_custom_call.1} parent=1 // pred_check_branch
      %76 = sbr.rel (0) target = $region37
    $region36: #{tpu_custom_call.1} parent=1 // pred_region
      _
    $region37: #{tpu_custom_call.1} parent=1 // pred_fallthru
      _
    // Predicated region
    $region38: #{tpu_custom_call.1} parent=1 // pred_check
      _
    $region39: #{tpu_custom_call.1} parent=1 // pred_check_branch
      %78 = sbr.rel (0) target = $region41
    $region40: #{tpu_custom_call.1} parent=1 // pred_region
      _
    $region41: #{tpu_custom_call.1} parent=1 // pred_fallthru
      _
    // Predicated region
    $region42: #{tpu_custom_call.1} parent=1 // pred_check
      _
    $region43: #{tpu_custom_call.1} parent=1 // pred_check_branch
      %80 = sbr.rel (0) target = $region45
    $region44: #{tpu_custom_call.1} parent=1 // pred_region
      %81 = dma.done [#allocation4], 1024
    $region45: #{tpu_custom_call.1} parent=1 // pred_fallthru
      _
    // Predicated region
    $region46: #{tpu_custom_call.1} parent=1 // pred_check
      _
    $region47: #{tpu_custom_call.1} parent=1 // pred_check_branch
      %83 = sbr.rel (0) target = $region49
    $region48: #{tpu_custom_call.1} parent=1 // pred_region
      %84 = dma.done [#allocation6], 768
    $region49: #{tpu_custom_call.1} parent=1 // pred_fallthru
      _
    // Predicated region
    $region50: #{tpu_custom_call.1} parent=1 // pred_check
      _
    $region51: #{tpu_custom_call.1} parent=1 // pred_check_branch
      %86 = sbr.rel (0) target = $region53
    $region52: #{tpu_custom_call.1} parent=1 // pred_region
      %87 = dma.done [#allocation6], 16384
    $region53: #{tpu_custom_call.1} parent=1 // pred_fallthru
      _
    // Predicated region
    $region54: #{tpu_custom_call.1} parent=1 // pred_check
      _
    $region55: #{tpu_custom_call.1} parent=1 // pred_check_branch
      %89 = sbr.rel (0) target = $region57
    $region56: #{tpu_custom_call.1} parent=1 // pred_region
      %90 = dma.done [#allocation9], 12288
    $region57: #{tpu_custom_call.1} parent=1 // pred_fallthru
      _
    %v91 = vld [vmem:[#allocation3] sm:$0xff]
    %v92 = vld [vmem:[#allocation3 + $0x8] sm:$0xff]
    %v93 = vld [vmem:[#allocation3 + $0x10] sm:$0xff]
    %v94 = vld [vmem:[#allocation3 + $0x18] sm:$0xff]
    %v95 = vld [vmem:[#allocation3 + $0x20] sm:$0xff]
    %v96 = vld [vmem:[#allocation3 + $0x28] sm:$0xff]
    %v97 = vld [vmem:[#allocation3 + $0x30] sm:$0xff]
    %v98 = vld [vmem:[#allocation3 + $0x38] sm:$0xff]
    %v99 = vld [vmem:[#allocation7] sm:$0xff]
    %v100 = vld [vmem:[#allocation7 + $0x8] sm:$0xff]
    %v101 = vld [vmem:[#allocation7 + $0x10] sm:$0xff]
    %v102 = vld [vmem:[#allocation7 + $0x18] sm:$0xff]
    %v103 = vld [vmem:[#allocation7 + $0x20] sm:$0xff]
    %v104 = vld [vmem:[#allocation7 + $0x28] sm:$0xff]
    %v105 = vld [vmem:[#allocation7 + $0x30] sm:$0xff]
    %v106 = vld [vmem:[#allocation7 + $0x38] sm:$0xff]
    %v107 = vld [vmem:[#allocation7 + $0x40] sm:$0xff]
    %v108 = vld [vmem:[#allocation7 + $0x48] sm:$0xff]
    %v109 = vld [vmem:[#allocation7 + $0x50] sm:$0xff]
    %v110 = vld [vmem:[#allocation7 + $0x58] sm:$0xff]
    %v111 = vld [vmem:[#allocation7 + $0x60] sm:$0xff]
    %v112 = vld [vmem:[#allocation7 + $0x68] sm:$0xff]
    %v113 = vld [vmem:[#allocation7 + $0x70] sm:$0xff]
    %v114 = vld [vmem:[#allocation7 + $0x78] sm:$0xff]
    %v115 = vld [vmem:[#allocation7 + $0x80] sm:$0xff]
    %v116 = vld [vmem:[#allocation7 + $0x88] sm:$0xff]
    %v117 = vld [vmem:[#allocation7 + $0x90] sm:$0xff]
    %v118 = vld [vmem:[#allocation7 + $0x98] sm:$0xff]
    %v119 = vld [vmem:[#allocation7 + $0xa0] sm:$0xff]
    %v120 = vld [vmem:[#allocation7 + $0xa8] sm:$0xff]
    %v121 = vld [vmem:[#allocation7 + $0xb0] sm:$0xff]
    %v122 = vld [vmem:[#allocation7 + $0xb8] sm:$0xff]
    %v123 = vld [vmem:[#allocation7 + $0xc0] sm:$0xff]
    %v124 = vld [vmem:[#allocation7 + $0xc8] sm:$0xff]
    %v125 = vld [vmem:[#allocation7 + $0xd0] sm:$0xff]
    %v126 = vld [vmem:[#allocation7 + $0xd8] sm:$0xff]
    %v127 = vld [vmem:[#allocation7 + $0xe0] sm:$0xff]
    %v128 = vld [vmem:[#allocation7 + $0xe8] sm:$0xff]
    %v129 = vld [vmem:[#allocation7 + $0xf0] sm:$0xff]
    %v130 = vld [vmem:[#allocation7 + $0xf8] sm:$0xff]
    %v131 = vld [vmem:[#allocation7 + $0x100] sm:$0xff]
    %v132 = vld [vmem:[#allocation7 + $0x108] sm:$0xff]
    %v133 = vld [vmem:[#allocation7 + $0x110] sm:$0xff]
    %v134 = vld [vmem:[#allocation7 + $0x118] sm:$0xff]
    %v135 = vld [vmem:[#allocation7 + $0x120] sm:$0xff]
    %v136 = vld [vmem:[#allocation7 + $0x128] sm:$0xff]
    %v137 = vld [vmem:[#allocation7 + $0x130] sm:$0xff]
    %v138 = vld [vmem:[#allocation7 + $0x138] sm:$0xff]
    %v139 = vld [vmem:[#allocation7 + $0x140] sm:$0xff]
    %v140 = vld [vmem:[#allocation7 + $0x148] sm:$0xff]
    %v141 = vld [vmem:[#allocation7 + $0x150] sm:$0xff]
    %v142 = vld [vmem:[#allocation7 + $0x158] sm:$0xff]
    %v143 = vld [vmem:[#allocation7 + $0x160] sm:$0xff]
    %v144 = vld [vmem:[#allocation7 + $0x168] sm:$0xff]
    %v145 = vld [vmem:[#allocation7 + $0x170] sm:$0xff]
    %v146 = vld [vmem:[#allocation7 + $0x178] sm:$0xff]
    %v147 = vld [vmem:[#allocation7 + $0x180] sm:$0xff]
    %v148 = vld [vmem:[#allocation7 + $0x188] sm:$0xff]
    %v149 = vld [vmem:[#allocation7 + $0x190] sm:$0xff]
    %v150 = vld [vmem:[#allocation7 + $0x198] sm:$0xff]
    %v151 = vld [vmem:[#allocation7 + $0x1a0] sm:$0xff]
    %v152 = vld [vmem:[#allocation7 + $0x1a8] sm:$0xff]
    %v153 = vld [vmem:[#allocation7 + $0x1b0] sm:$0xff]
    %v154 = vld [vmem:[#allocation7 + $0x1b8] sm:$0xff]
    %v155 = vld [vmem:[#allocation7 + $0x1c0] sm:$0xff]
    %v156 = vld [vmem:[#allocation7 + $0x1c8] sm:$0xff]
    %v157 = vld [vmem:[#allocation7 + $0x1d0] sm:$0xff]
    %v158 = vld [vmem:[#allocation7 + $0x1d8] sm:$0xff]
    %v159 = vld [vmem:[#allocation7 + $0x1e0] sm:$0xff]
    %v160 = vld [vmem:[#allocation7 + $0x1e8] sm:$0xff]
    %v161 = vld [vmem:[#allocation7 + $0x1f0] sm:$0xff]
    %v162 = vld [vmem:[#allocation7 + $0x1f8] sm:$0xff]
    %v163 = vld [vmem:[#allocation7 + $0x200] sm:$0xff]
    %v164 = vld [vmem:[#allocation7 + $0x208] sm:$0xff]
    %v165 = vld [vmem:[#allocation7 + $0x210] sm:$0xff]
    %v166 = vld [vmem:[#allocation7 + $0x218] sm:$0xff]
    %v167 = vld [vmem:[#allocation7 + $0x220] sm:$0xff]
    %v168 = vld [vmem:[#allocation7 + $0x228] sm:$0xff]
    %v169 = vld [vmem:[#allocation7 + $0x230] sm:$0xff]
    %v170 = vld [vmem:[#allocation7 + $0x238] sm:$0xff]
    %v171 = vld [vmem:[#allocation7 + $0x240] sm:$0xff]
    %v172 = vld [vmem:[#allocation7 + $0x248] sm:$0xff]
    %v173 = vld [vmem:[#allocation7 + $0x250] sm:$0xff]
    %v174 = vld [vmem:[#allocation7 + $0x258] sm:$0xff]
    %v175 = vld [vmem:[#allocation7 + $0x260] sm:$0xff]
    %v176 = vld [vmem:[#allocation7 + $0x268] sm:$0xff]
    %v177 = vld [vmem:[#allocation7 + $0x270] sm:$0xff]
    %v178 = vld [vmem:[#allocation7 + $0x278] sm:$0xff]
    %v179 = vld [vmem:[#allocation7 + $0x280] sm:$0xff]
    %v180 = vld [vmem:[#allocation7 + $0x288] sm:$0xff]
    %v181 = vld [vmem:[#allocation7 + $0x290] sm:$0xff]
    %v182 = vld [vmem:[#allocation7 + $0x298] sm:$0xff]
    %v183 = vld [vmem:[#allocation7 + $0x2a0] sm:$0xff]
    %v184 = vld [vmem:[#allocation7 + $0x2a8] sm:$0xff]
    %v185 = vld [vmem:[#allocation7 + $0x2b0] sm:$0xff]
    %v186 = vld [vmem:[#allocation7 + $0x2b8] sm:$0xff]
    %v187 = vld [vmem:[#allocation7 + $0x2c0] sm:$0xff]
    %v188 = vld [vmem:[#allocation7 + $0x2c8] sm:$0xff]
    %v189 = vld [vmem:[#allocation7 + $0x2d0] sm:$0xff]
    %v190 = vld [vmem:[#allocation7 + $0x2d8] sm:$0xff]
    %v191 = vld [vmem:[#allocation7 + $0x2e0] sm:$0xff]
    %v192 = vld [vmem:[#allocation7 + $0x2e8] sm:$0xff]
    %v193 = vld [vmem:[#allocation7 + $0x2f0] sm:$0xff]
    %v194 = vld [vmem:[#allocation7 + $0x2f8] sm:$0xff]
    %v195 = vld [vmem:[#allocation7 + $0x300] sm:$0xff]
    %v196 = vld [vmem:[#allocation7 + $0x308] sm:$0xff]
    %v197 = vld [vmem:[#allocation7 + $0x310] sm:$0xff]
    %v198 = vld [vmem:[#allocation7 + $0x318] sm:$0xff]
    %v199 = vld [vmem:[#allocation7 + $0x320] sm:$0xff]
    %v200 = vld [vmem:[#allocation7 + $0x328] sm:$0xff]
    %v201 = vld [vmem:[#allocation7 + $0x330] sm:$0xff]
    %v202 = vld [vmem:[#allocation7 + $0x338] sm:$0xff]
    %v203 = vld [vmem:[#allocation7 + $0x340] sm:$0xff]
    %v204 = vld [vmem:[#allocation7 + $0x348] sm:$0xff]
    %v205 = vld [vmem:[#allocation7 + $0x350] sm:$0xff]
    %v206 = vld [vmem:[#allocation7 + $0x358] sm:$0xff]
    %v207 = vld [vmem:[#allocation7 + $0x360] sm:$0xff]
    %v208 = vld [vmem:[#allocation7 + $0x368] sm:$0xff]
    %v209 = vld [vmem:[#allocation7 + $0x370] sm:$0xff]
    %v210 = vld [vmem:[#allocation7 + $0x378] sm:$0xff]
    %v211 = vld [vmem:[#allocation7 + $0x380] sm:$0xff]
    %v212 = vld [vmem:[#allocation7 + $0x388] sm:$0xff]
    %v213 = vld [vmem:[#allocation7 + $0x390] sm:$0xff]
    %v214 = vld [vmem:[#allocation7 + $0x398] sm:$0xff]
    %v215 = vld [vmem:[#allocation7 + $0x3a0] sm:$0xff]
    %v216 = vld [vmem:[#allocation7 + $0x3a8] sm:$0xff]
    %v217 = vld [vmem:[#allocation7 + $0x3b0] sm:$0xff]
    %v218 = vld [vmem:[#allocation7 + $0x3b8] sm:$0xff]
    %v219 = vld [vmem:[#allocation7 + $0x3c0] sm:$0xff]
    %v220 = vld [vmem:[#allocation7 + $0x3c8] sm:$0xff]
    %v221 = vld [vmem:[#allocation7 + $0x3d0] sm:$0xff]
    %v222 = vld [vmem:[#allocation7 + $0x3d8] sm:$0xff]
    %v223 = vld [vmem:[#allocation7 + $0x3e0] sm:$0xff]
    %v224 = vld [vmem:[#allocation7 + $0x3e8] sm:$0xff]
    %v225 = vld [vmem:[#allocation7 + $0x3f0] sm:$0xff]
    %v226 = vld [vmem:[#allocation7 + $0x3f8] sm:$0xff]
    %v227 = vld [vmem:[#allocation5] sm:$0xff]
    %v228 = vld [vmem:[#allocation5 + $0x8] sm:$0xff]
    %v229 = vld [vmem:[#allocation5 + $0x10] sm:$0xff]
    %v230 = vld [vmem:[#allocation5 + $0x18] sm:$0xff]
    %v231 = vld [vmem:[#allocation5 + $0x20] sm:$0xff]
    %v232 = vld [vmem:[#allocation5 + $0x28] sm:$0xff]
    %v233 = vld [vmem:[#allocation8] sm:$0xff]
    %v234 = vld [vmem:[#allocation8 + $0x8] sm:$0xff]
    %v235 = vld [vmem:[#allocation8 + $0x10] sm:$0xff]
    %v236 = vld [vmem:[#allocation8 + $0x18] sm:$0xff]
    %v237 = vld [vmem:[#allocation8 + $0x20] sm:$0xff]
    %v238 = vld [vmem:[#allocation8 + $0x28] sm:$0xff]
    %v239 = vld [vmem:[#allocation8 + $0x30] sm:$0xff]
    %v240 = vld [vmem:[#allocation8 + $0x38] sm:$0xff]
    %v241 = vld [vmem:[#allocation8 + $0x40] sm:$0xff]
    %v242 = vld [vmem:[#allocation8 + $0x48] sm:$0xff]
    %v243 = vld [vmem:[#allocation8 + $0x50] sm:$0xff]
    %v244 = vld [vmem:[#allocation8 + $0x58] sm:$0xff]
    %v245 = vld [vmem:[#allocation8 + $0x60] sm:$0xff]
    %v246 = vld [vmem:[#allocation8 + $0x68] sm:$0xff]
    %v247 = vld [vmem:[#allocation8 + $0x70] sm:$0xff]
    %v248 = vld [vmem:[#allocation8 + $0x78] sm:$0xff]
    %v249 = vld [vmem:[#allocation8 + $0x80] sm:$0xff]
    %v250 = vld [vmem:[#allocation8 + $0x88] sm:$0xff]
    %v251 = vld [vmem:[#allocation8 + $0x90] sm:$0xff]
    %v252 = vld [vmem:[#allocation8 + $0x98] sm:$0xff]
    %v253 = vld [vmem:[#allocation8 + $0xa0] sm:$0xff]
    %v254 = vld [vmem:[#allocation8 + $0xa8] sm:$0xff]
    %v255 = vld [vmem:[#allocation8 + $0xb0] sm:$0xff]
    %v256 = vld [vmem:[#allocation8 + $0xb8] sm:$0xff]
    %v257 = vld [vmem:[#allocation8 + $0xc0] sm:$0xff]
    %v258 = vld [vmem:[#allocation8 + $0xc8] sm:$0xff]
    %v259 = vld [vmem:[#allocation8 + $0xd0] sm:$0xff]
    %v260 = vld [vmem:[#allocation8 + $0xd8] sm:$0xff]
    %v261 = vld [vmem:[#allocation8 + $0xe0] sm:$0xff]
    %v262 = vld [vmem:[#allocation8 + $0xe8] sm:$0xff]
    %v263 = vld [vmem:[#allocation8 + $0xf0] sm:$0xff]
    %v264 = vld [vmem:[#allocation8 + $0xf8] sm:$0xff]
    %v265 = vld [vmem:[#allocation8 + $0x100] sm:$0xff]
    %v266 = vld [vmem:[#allocation8 + $0x108] sm:$0xff]
    %v267 = vld [vmem:[#allocation8 + $0x110] sm:$0xff]
    %v268 = vld [vmem:[#allocation8 + $0x118] sm:$0xff]
    %v269 = vld [vmem:[#allocation8 + $0x120] sm:$0xff]
    %v270 = vld [vmem:[#allocation8 + $0x128] sm:$0xff]
    %v271 = vld [vmem:[#allocation8 + $0x130] sm:$0xff]
    %v272 = vld [vmem:[#allocation8 + $0x138] sm:$0xff]
    %v273 = vld [vmem:[#allocation8 + $0x140] sm:$0xff]
    %v274 = vld [vmem:[#allocation8 + $0x148] sm:$0xff]
    %v275 = vld [vmem:[#allocation8 + $0x150] sm:$0xff]
    %v276 = vld [vmem:[#allocation8 + $0x158] sm:$0xff]
    %v277 = vld [vmem:[#allocation8 + $0x160] sm:$0xff]
    %v278 = vld [vmem:[#allocation8 + $0x168] sm:$0xff]
    %v279 = vld [vmem:[#allocation8 + $0x170] sm:$0xff]
    %v280 = vld [vmem:[#allocation8 + $0x178] sm:$0xff]
    %v281 = vld [vmem:[#allocation8 + $0x180] sm:$0xff]
    %v282 = vld [vmem:[#allocation8 + $0x188] sm:$0xff]
    %v283 = vld [vmem:[#allocation8 + $0x190] sm:$0xff]
    %v284 = vld [vmem:[#allocation8 + $0x198] sm:$0xff]
    %v285 = vld [vmem:[#allocation8 + $0x1a0] sm:$0xff]
    %v286 = vld [vmem:[#allocation8 + $0x1a8] sm:$0xff]
    %v287 = vld [vmem:[#allocation8 + $0x1b0] sm:$0xff]
    %v288 = vld [vmem:[#allocation8 + $0x1b8] sm:$0xff]
    %v289 = vld [vmem:[#allocation8 + $0x1c0] sm:$0xff]
    %v290 = vld [vmem:[#allocation8 + $0x1c8] sm:$0xff]
    %v291 = vld [vmem:[#allocation8 + $0x1d0] sm:$0xff]
    %v292 = vld [vmem:[#allocation8 + $0x1d8] sm:$0xff]
    %v293 = vld [vmem:[#allocation8 + $0x1e0] sm:$0xff]
    %v294 = vld [vmem:[#allocation8 + $0x1e8] sm:$0xff]
    %v295 = vld [vmem:[#allocation8 + $0x1f0] sm:$0xff]
    %v296 = vld [vmem:[#allocation8 + $0x1f8] sm:$0xff]
    %v297 = vld [vmem:[#allocation8 + $0x200] sm:$0xff]
    %v298 = vld [vmem:[#allocation8 + $0x208] sm:$0xff]
    %v299 = vld [vmem:[#allocation8 + $0x210] sm:$0xff]
    %v300 = vld [vmem:[#allocation8 + $0x218] sm:$0xff]
    %v301 = vld [vmem:[#allocation8 + $0x220] sm:$0xff]
    %v302 = vld [vmem:[#allocation8 + $0x228] sm:$0xff]
    %v303 = vld [vmem:[#allocation8 + $0x230] sm:$0xff]
    %v304 = vld [vmem:[#allocation8 + $0x238] sm:$0xff]
    %v305 = vld [vmem:[#allocation8 + $0x240] sm:$0xff]
    %v306 = vld [vmem:[#allocation8 + $0x248] sm:$0xff]
    %v307 = vld [vmem:[#allocation8 + $0x250] sm:$0xff]
    %v308 = vld [vmem:[#allocation8 + $0x258] sm:$0xff]
    %v309 = vld [vmem:[#allocation8 + $0x260] sm:$0xff]
    %v310 = vld [vmem:[#allocation8 + $0x268] sm:$0xff]
    %v311 = vld [vmem:[#allocation8 + $0x270] sm:$0xff]
    %v312 = vld [vmem:[#allocation8 + $0x278] sm:$0xff]
    %v313 = vld [vmem:[#allocation8 + $0x280] sm:$0xff]
    %v314 = vld [vmem:[#allocation8 + $0x288] sm:$0xff]
    %v315 = vld [vmem:[#allocation8 + $0x290] sm:$0xff]
    %v316 = vld [vmem:[#allocation8 + $0x298] sm:$0xff]
    %v317 = vld [vmem:[#allocation8 + $0x2a0] sm:$0xff]
    %v318 = vld [vmem:[#allocation8 + $0x2a8] sm:$0xff]
    %v319 = vld [vmem:[#allocation8 + $0x2b0] sm:$0xff]
    %v320 = vld [vmem:[#allocation8 + $0x2b8] sm:$0xff]
    %v321 = vld [vmem:[#allocation8 + $0x2c0] sm:$0xff]
    %v322 = vld [vmem:[#allocation8 + $0x2c8] sm:$0xff]
    %v323 = vld [vmem:[#allocation8 + $0x2d0] sm:$0xff]
    %v324 = vld [vmem:[#allocation8 + $0x2d8] sm:$0xff]
    %v325 = vld [vmem:[#allocation8 + $0x2e0] sm:$0xff]
    %v326 = vld [vmem:[#allocation8 + $0x2e8] sm:$0xff]
    %v327 = vld [vmem:[#allocation8 + $0x2f0] sm:$0xff]
    %v328 = vld [vmem:[#allocation8 + $0x2f8] sm:$0xff]
    %v335 = vunpack.c.l.b16 %v227
    %v336 = vunpack.c.h.b16 %v227
    %v337 = vunpack.c.l.b16 %v228
    %v338 = vunpack.c.h.b16 %v228
    %v339 = vunpack.c.l.b16 %v229
    %v340 = vunpack.c.h.b16 %v229
    %v341 = vunpack.c.l.b16 %v230
    %v342 = vunpack.c.h.b16 %v230
    %v343 = vunpack.c.l.b16 %v231
    %v344 = vunpack.c.h.b16 %v231
    %v345 = vunpack.c.l.b16 %v232
    %v346 = vunpack.c.h.b16 %v232
    %v347 = vpack.c.b16 %v341, %v335
    %v348 = vpack.c.b16 %v342, %v336
    %v349 = vpack.c.b16 %v343, %v337
    %v350 = vpack.c.b16 %v344, %v338
    %v351 = vpack.c.b16 %v345, %v339
    %v352 = vpack.c.b16 %v346, %v340
    %v455 = vunpack.c.l.b16 %v233
    %v456 = vunpack.c.h.b16 %v233
    %v457 = vunpack.c.l.b16 %v234
    %v458 = vunpack.c.h.b16 %v234
    %v459 = vunpack.c.l.b16 %v235
    %v460 = vunpack.c.h.b16 %v235
    %v461 = vunpack.c.l.b16 %v236
    %v462 = vunpack.c.h.b16 %v236
    %v463 = vunpack.c.l.b16 %v237
    %v464 = vunpack.c.h.b16 %v237
    %v465 = vunpack.c.l.b16 %v238
    %v466 = vunpack.c.h.b16 %v238
    %v467 = vunpack.c.l.b16 %v239
    %v468 = vunpack.c.h.b16 %v239
    %v469 = vunpack.c.l.b16 %v240
    %v470 = vunpack.c.h.b16 %v240
    %v471 = vunpack.c.l.b16 %v241
    %v472 = vunpack.c.h.b16 %v241
    %v473 = vunpack.c.l.b16 %v242
    %v474 = vunpack.c.h.b16 %v242
    %v475 = vunpack.c.l.b16 %v243
    %v476 = vunpack.c.h.b16 %v243
    %v477 = vunpack.c.l.b16 %v244
    %v478 = vunpack.c.h.b16 %v244
    %v479 = vunpack.c.l.b16 %v245
    %v480 = vunpack.c.h.b16 %v245
    %v481 = vunpack.c.l.b16 %v246
    %v482 = vunpack.c.h.b16 %v246
    %v483 = vunpack.c.l.b16 %v247
    %v484 = vunpack.c.h.b16 %v247
    %v485 = vunpack.c.l.b16 %v248
    %v486 = vunpack.c.h.b16 %v248
    %v487 = vunpack.c.l.b16 %v249
    %v488 = vunpack.c.h.b16 %v249
    %v489 = vunpack.c.l.b16 %v250
    %v490 = vunpack.c.h.b16 %v250
    %v491 = vunpack.c.l.b16 %v251
    %v492 = vunpack.c.h.b16 %v251
    %v493 = vunpack.c.l.b16 %v252
    %v494 = vunpack.c.h.b16 %v252
    %v495 = vunpack.c.l.b16 %v253
    %v496 = vunpack.c.h.b16 %v253
    %v497 = vunpack.c.l.b16 %v254
    %v498 = vunpack.c.h.b16 %v254
    %v499 = vunpack.c.l.b16 %v255
    %v500 = vunpack.c.h.b16 %v255
    %v501 = vunpack.c.l.b16 %v256
    %v502 = vunpack.c.h.b16 %v256
    %v503 = vunpack.c.l.b16 %v257
    %v504 = vunpack.c.h.b16 %v257
    %v505 = vunpack.c.l.b16 %v258
    %v506 = vunpack.c.h.b16 %v258
    %v507 = vunpack.c.l.b16 %v259
    %v508 = vunpack.c.h.b16 %v259
    %v509 = vunpack.c.l.b16 %v260
    %v510 = vunpack.c.h.b16 %v260
    %v511 = vunpack.c.l.b16 %v261
    %v512 = vunpack.c.h.b16 %v261
    %v513 = vunpack.c.l.b16 %v262
    %v514 = vunpack.c.h.b16 %v262
    %v515 = vunpack.c.l.b16 %v263
    %v516 = vunpack.c.h.b16 %v263
    %v517 = vunpack.c.l.b16 %v264
    %v518 = vunpack.c.h.b16 %v264
    %v519 = vunpack.c.l.b16 %v265
    %v520 = vunpack.c.h.b16 %v265
    %v521 = vunpack.c.l.b16 %v266
    %v522 = vunpack.c.h.b16 %v266
    %v523 = vunpack.c.l.b16 %v267
    %v524 = vunpack.c.h.b16 %v267
    %v525 = vunpack.c.l.b16 %v268
    %v526 = vunpack.c.h.b16 %v268
    %v527 = vunpack.c.l.b16 %v269
    %v528 = vunpack.c.h.b16 %v269
    %v529 = vunpack.c.l.b16 %v270
    %v530 = vunpack.c.h.b16 %v270
    %v531 = vunpack.c.l.b16 %v271
    %v532 = vunpack.c.h.b16 %v271
    %v533 = vunpack.c.l.b16 %v272
    %v534 = vunpack.c.h.b16 %v272
    %v535 = vunpack.c.l.b16 %v273
    %v536 = vunpack.c.h.b16 %v273
    %v537 = vunpack.c.l.b16 %v274
    %v538 = vunpack.c.h.b16 %v274
    %v539 = vunpack.c.l.b16 %v275
    %v540 = vunpack.c.h.b16 %v275
    %v541 = vunpack.c.l.b16 %v276
    %v542 = vunpack.c.h.b16 %v276
    %v543 = vunpack.c.l.b16 %v277
    %v544 = vunpack.c.h.b16 %v277
    %v545 = vunpack.c.l.b16 %v278
    %v546 = vunpack.c.h.b16 %v278
    %v547 = vunpack.c.l.b16 %v279
    %v548 = vunpack.c.h.b16 %v279
    %v549 = vunpack.c.l.b16 %v280
    %v550 = vunpack.c.h.b16 %v280
    %v551 = vunpack.c.l.b16 %v281
    %v552 = vunpack.c.h.b16 %v281
    %v553 = vunpack.c.l.b16 %v282
    %v554 = vunpack.c.h.b16 %v282
    %v555 = vunpack.c.l.b16 %v283
    %v556 = vunpack.c.h.b16 %v283
    %v557 = vunpack.c.l.b16 %v284
    %v558 = vunpack.c.h.b16 %v284
    %v559 = vunpack.c.l.b16 %v285
    %v560 = vunpack.c.h.b16 %v285
    %v561 = vunpack.c.l.b16 %v286
    %v562 = vunpack.c.h.b16 %v286
    %v563 = vunpack.c.l.b16 %v287
    %v564 = vunpack.c.h.b16 %v287
    %v565 = vunpack.c.l.b16 %v288
    %v566 = vunpack.c.h.b16 %v288
    %v567 = vunpack.c.l.b16 %v289
    %v568 = vunpack.c.h.b16 %v289
    %v569 = vunpack.c.l.b16 %v290
    %v570 = vunpack.c.h.b16 %v290
    %v571 = vunpack.c.l.b16 %v291
    %v572 = vunpack.c.h.b16 %v291
    %v573 = vunpack.c.l.b16 %v292
    %v574 = vunpack.c.h.b16 %v292
    %v575 = vunpack.c.l.b16 %v293
    %v576 = vunpack.c.h.b16 %v293
    %v577 = vunpack.c.l.b16 %v294
    %v578 = vunpack.c.h.b16 %v294
    %v579 = vunpack.c.l.b16 %v295
    %v580 = vunpack.c.h.b16 %v295
    %v581 = vunpack.c.l.b16 %v296
    %v582 = vunpack.c.h.b16 %v296
    %v583 = vunpack.c.l.b16 %v297
    %v584 = vunpack.c.h.b16 %v297
    %v585 = vunpack.c.l.b16 %v298
    %v586 = vunpack.c.h.b16 %v298
    %v587 = vunpack.c.l.b16 %v299
    %v588 = vunpack.c.h.b16 %v299
    %v589 = vunpack.c.l.b16 %v300
    %v590 = vunpack.c.h.b16 %v300
    %v591 = vunpack.c.l.b16 %v301
    %v592 = vunpack.c.h.b16 %v301
    %v593 = vunpack.c.l.b16 %v302
    %v594 = vunpack.c.h.b16 %v302
    %v595 = vunpack.c.l.b16 %v303
    %v596 = vunpack.c.h.b16 %v303
    %v597 = vunpack.c.l.b16 %v304
    %v598 = vunpack.c.h.b16 %v304
    %v599 = vunpack.c.l.b16 %v305
    %v600 = vunpack.c.h.b16 %v305
    %v601 = vunpack.c.l.b16 %v306
    %v602 = vunpack.c.h.b16 %v306
    %v603 = vunpack.c.l.b16 %v307
    %v604 = vunpack.c.h.b16 %v307
    %v605 = vunpack.c.l.b16 %v308
    %v606 = vunpack.c.h.b16 %v308
    %v607 = vunpack.c.l.b16 %v309
    %v608 = vunpack.c.h.b16 %v309
    %v609 = vunpack.c.l.b16 %v310
    %v610 = vunpack.c.h.b16 %v310
    %v611 = vunpack.c.l.b16 %v311
    %v612 = vunpack.c.h.b16 %v311
    %v613 = vunpack.c.l.b16 %v312
    %v614 = vunpack.c.h.b16 %v312
    %v615 = vunpack.c.l.b16 %v313
    %v616 = vunpack.c.h.b16 %v313
    %v617 = vunpack.c.l.b16 %v314
    %v618 = vunpack.c.h.b16 %v314
    %v619 = vunpack.c.l.b16 %v315
    %v620 = vunpack.c.h.b16 %v315
    %v621 = vunpack.c.l.b16 %v316
    %v622 = vunpack.c.h.b16 %v316
    %v623 = vunpack.c.l.b16 %v317
    %v624 = vunpack.c.h.b16 %v317
    %v625 = vunpack.c.l.b16 %v318
    %v626 = vunpack.c.h.b16 %v318
    %v627 = vunpack.c.l.b16 %v319
    %v628 = vunpack.c.h.b16 %v319
    %v629 = vunpack.c.l.b16 %v320
    %v630 = vunpack.c.h.b16 %v320
    %v631 = vunpack.c.l.b16 %v321
    %v632 = vunpack.c.h.b16 %v321
    %v633 = vunpack.c.l.b16 %v322
    %v634 = vunpack.c.h.b16 %v322
    %v635 = vunpack.c.l.b16 %v323
    %v636 = vunpack.c.h.b16 %v323
    %v637 = vunpack.c.l.b16 %v324
    %v638 = vunpack.c.h.b16 %v324
    %v639 = vunpack.c.l.b16 %v325
    %v640 = vunpack.c.h.b16 %v325
    %v641 = vunpack.c.l.b16 %v326
    %v642 = vunpack.c.h.b16 %v326
    %v643 = vunpack.c.l.b16 %v327
    %v644 = vunpack.c.h.b16 %v327
    %v645 = vunpack.c.l.b16 %v328
    %v646 = vunpack.c.h.b16 %v328
    %v647 = vpack.c.b16 %v457, %v455
    %v648 = vpack.c.b16 %v458, %v456
    %v649 = vpack.c.b16 %v461, %v459
    %v650 = vpack.c.b16 %v462, %v460
    %v651 = vpack.c.b16 %v465, %v463
    %v652 = vpack.c.b16 %v466, %v464
    %v653 = vpack.c.b16 %v469, %v467
    %v654 = vpack.c.b16 %v470, %v468
    %v655 = vpack.c.b16 %v473, %v471
    %v656 = vpack.c.b16 %v474, %v472
    %v657 = vpack.c.b16 %v477, %v475
    %v658 = vpack.c.b16 %v478, %v476
    %v659 = vpack.c.b16 %v481, %v479
    %v660 = vpack.c.b16 %v482, %v480
    %v661 = vpack.c.b16 %v485, %v483
    %v662 = vpack.c.b16 %v486, %v484
    %v663 = vpack.c.b16 %v489, %v487
    %v664 = vpack.c.b16 %v490, %v488
    %v665 = vpack.c.b16 %v493, %v491
    %v666 = vpack.c.b16 %v494, %v492
    %v667 = vpack.c.b16 %v497, %v495
    %v668 = vpack.c.b16 %v498, %v496
    %v669 = vpack.c.b16 %v501, %v499
    %v670 = vpack.c.b16 %v502, %v500
    %v671 = vpack.c.b16 %v505, %v503
    %v672 = vpack.c.b16 %v506, %v504
    %v673 = vpack.c.b16 %v509, %v507
    %v674 = vpack.c.b16 %v510, %v508
    %v675 = vpack.c.b16 %v513, %v511
    %v676 = vpack.c.b16 %v514, %v512
    %v677 = vpack.c.b16 %v517, %v515
    %v678 = vpack.c.b16 %v518, %v516
    %v679 = vpack.c.b16 %v521, %v519
    %v680 = vpack.c.b16 %v522, %v520
    %v681 = vpack.c.b16 %v525, %v523
    %v682 = vpack.c.b16 %v526, %v524
    %v683 = vpack.c.b16 %v529, %v527
    %v684 = vpack.c.b16 %v530, %v528
    %v685 = vpack.c.b16 %v533, %v531
    %v686 = vpack.c.b16 %v534, %v532
    %v687 = vpack.c.b16 %v537, %v535
    %v688 = vpack.c.b16 %v538, %v536
    %v689 = vpack.c.b16 %v541, %v539
    %v690 = vpack.c.b16 %v542, %v540
    %v691 = vpack.c.b16 %v545, %v543
    %v692 = vpack.c.b16 %v546, %v544
    %v693 = vpack.c.b16 %v549, %v547
    %v694 = vpack.c.b16 %v550, %v548
    %v695 = vpack.c.b16 %v553, %v551
    %v696 = vpack.c.b16 %v554, %v552
    %v697 = vpack.c.b16 %v557, %v555
    %v698 = vpack.c.b16 %v558, %v556
    %v699 = vpack.c.b16 %v561, %v559
    %v700 = vpack.c.b16 %v562, %v560
    %v701 = vpack.c.b16 %v565, %v563
    %v702 = vpack.c.b16 %v566, %v564
    %v703 = vpack.c.b16 %v569, %v567
    %v704 = vpack.c.b16 %v570, %v568
    %v705 = vpack.c.b16 %v573, %v571
    %v706 = vpack.c.b16 %v574, %v572
    %v707 = vpack.c.b16 %v577, %v575
    %v708 = vpack.c.b16 %v578, %v576
    %v709 = vpack.c.b16 %v581, %v579
    %v710 = vpack.c.b16 %v582, %v580
    %v711 = vpack.c.b16 %v585, %v583
    %v712 = vpack.c.b16 %v586, %v584
    %v713 = vpack.c.b16 %v589, %v587
    %v714 = vpack.c.b16 %v590, %v588
    %v715 = vpack.c.b16 %v593, %v591
    %v716 = vpack.c.b16 %v594, %v592
    %v717 = vpack.c.b16 %v597, %v595
    %v718 = vpack.c.b16 %v598, %v596
    %v719 = vpack.c.b16 %v601, %v599
    %v720 = vpack.c.b16 %v602, %v600
    %v721 = vpack.c.b16 %v605, %v603
    %v722 = vpack.c.b16 %v606, %v604
    %v723 = vpack.c.b16 %v609, %v607
    %v724 = vpack.c.b16 %v610, %v608
    %v725 = vpack.c.b16 %v613, %v611
    %v726 = vpack.c.b16 %v614, %v612
    %v727 = vpack.c.b16 %v617, %v615
    %v728 = vpack.c.b16 %v618, %v616
    %v729 = vpack.c.b16 %v621, %v619
    %v730 = vpack.c.b16 %v622, %v620
    %v731 = vpack.c.b16 %v625, %v623
    %v732 = vpack.c.b16 %v626, %v624
    %v733 = vpack.c.b16 %v629, %v627
    %v734 = vpack.c.b16 %v630, %v628
    %v735 = vpack.c.b16 %v633, %v631
    %v736 = vpack.c.b16 %v634, %v632
    %v737 = vpack.c.b16 %v637, %v635
    %v738 = vpack.c.b16 %v638, %v636
    %v739 = vpack.c.b16 %v641, %v639
    %v740 = vpack.c.b16 %v642, %v640
    %v741 = vpack.c.b16 %v645, %v643
    %v742 = vpack.c.b16 %v646, %v644
    %839 = vmatprep.subr.bf16.mxu0 %v648
    %840 = vmatpush1.bf16.msra.mxu0 %v647
    %841 = vmatprep.subr.bf16.mxu0 %v650
    %842 = vmatpush1.bf16.msra.mxu0 %v649
    %843 = vmatprep.subr.bf16.mxu0 %v652
    %844 = vmatpush1.bf16.msra.mxu0 %v651
    %845 = vmatprep.subr.bf16.mxu0 %v654
    %846 = vmatpush1.bf16.msra.mxu0 %v653
    %847 = vmatprep.subr.bf16.mxu0 %v656
    %848 = vmatpush1.bf16.msra.mxu0 %v655
    %849 = vmatprep.subr.bf16.mxu0 %v658
    %850 = vmatpush1.bf16.msra.mxu0 %v657
    %851 = vmatprep.subr.bf16.mxu0 %v660
    %852 = vmatpush1.bf16.msra.mxu0 %v659
    %853 = vmatprep.subr.bf16.mxu0 %v662
    %854 = vmatpush1.bf16.msra.mxu0 %v661
    %855 = vmatprep.subr.bf16.mxu0 %v664
    %856 = vmatpush1.bf16.msra.mxu0 %v663
    %857 = vmatprep.subr.bf16.mxu0 %v666
    %858 = vmatpush1.bf16.msra.mxu0 %v665
    %859 = vmatprep.subr.bf16.mxu0 %v668
    %860 = vmatpush1.bf16.msra.mxu0 %v667
    %861 = vmatprep.subr.bf16.mxu0 %v670
    %862 = vmatpush1.bf16.msra.mxu0 %v669
    %863 = vmatprep.subr.bf16.mxu0 %v672
    %864 = vmatpush1.bf16.msra.mxu0 %v671
    %865 = vmatprep.subr.bf16.mxu0 %v674
    %866 = vmatpush1.bf16.msra.mxu0 %v673
    %867 = vmatprep.subr.bf16.mxu0 %v676
    %868 = vmatpush1.bf16.msra.mxu0 %v675
    %869 = vmatprep.subr.bf16.mxu0 %v678
    %870 = vmatpush1.bf16.msra.mxu0 %v677
    %871 = vmatprep.mubr.bf16.mxu0 %v348
    %872 = vmatmul.mubr.bf16.gmra.mrb[0].mxu0 %v347
    %v873 = vpop.f32.mrb[0].mxu0
    %v874 = vadd.f32 0.0, %v873
    %v875 = vpop.f32.mrb[0].mxu0
    %v876 = vadd.f32 0.0, %v875
    %v877 = vpop.f32.mrb[0].mxu0
    %v878 = vadd.f32 0.0, %v877
    %v879 = vpop.f32.mrb[0].mxu0
    %v880 = vadd.f32 0.0, %v879
    %881 = vdwg.mxu0
    %882 = vmatprep.subr.bf16.mxu0 %v680
    %883 = vmatpush1.bf16.msra.mxu0 %v679
    %884 = vmatprep.subr.bf16.mxu0 %v682
    %885 = vmatpush1.bf16.msra.mxu0 %v681
    %886 = vmatprep.subr.bf16.mxu0 %v684
    %887 = vmatpush1.bf16.msra.mxu0 %v683
    %888 = vmatprep.subr.bf16.mxu0 %v686
    %889 = vmatpush1.bf16.msra.mxu0 %v685
    %890 = vmatprep.subr.bf16.mxu0 %v688
    %891 = vmatpush1.bf16.msra.mxu0 %v687
    %892 = vmatprep.subr.bf16.mxu0 %v690
    %893 = vmatpush1.bf16.msra.mxu0 %v689
    %894 = vmatprep.subr.bf16.mxu0 %v692
    %895 = vmatpush1.bf16.msra.mxu0 %v691
    %896 = vmatprep.subr.bf16.mxu0 %v694
    %897 = vmatpush1.bf16.msra.mxu0 %v693
    %898 = vmatprep.subr.bf16.mxu0 %v696
    %899 = vmatpush1.bf16.msra.mxu0 %v695
    %900 = vmatprep.subr.bf16.mxu0 %v698
    %901 = vmatpush1.bf16.msra.mxu0 %v697
    %902 = vmatprep.subr.bf16.mxu0 %v700
    %903 = vmatpush1.bf16.msra.mxu0 %v699
    %904 = vmatprep.subr.bf16.mxu0 %v702
    %905 = vmatpush1.bf16.msra.mxu0 %v701
    %906 = vmatprep.subr.bf16.mxu0 %v704
    %907 = vmatpush1.bf16.msra.mxu0 %v703
    %908 = vmatprep.subr.bf16.mxu0 %v706
    %909 = vmatpush1.bf16.msra.mxu0 %v705
    %910 = vmatprep.subr.bf16.mxu0 %v708
    %911 = vmatpush1.bf16.msra.mxu0 %v707
    %912 = vmatprep.subr.bf16.mxu0 %v710
    %913 = vmatpush1.bf16.msra.mxu0 %v709
    %914 = vmatprep.mubr.bf16.mxu0 %v350
    %915 = vmatmul.mubr.bf16.gmra.mrb[0].mxu0 %v349
    %v916 = vpop.f32.mrb[0].mxu0
    %v917 = vadd.f32 %v874, %v916
    %v918 = vpop.f32.mrb[0].mxu0
    %v919 = vadd.f32 %v876, %v918
    %v920 = vpop.f32.mrb[0].mxu0
    %v921 = vadd.f32 %v878, %v920
    %v922 = vpop.f32.mrb[0].mxu0
    %v923 = vadd.f32 %v880, %v922
    %924 = vdwg.mxu0
    %925 = vmatprep.subr.bf16.mxu0 %v712
    %926 = vmatpush1.bf16.msra.mxu0 %v711
    %927 = vmatprep.subr.bf16.mxu0 %v714
    %928 = vmatpush1.bf16.msra.mxu0 %v713
    %929 = vmatprep.subr.bf16.mxu0 %v716
    %930 = vmatpush1.bf16.msra.mxu0 %v715
    %931 = vmatprep.subr.bf16.mxu0 %v718
    %932 = vmatpush1.bf16.msra.mxu0 %v717
    %933 = vmatprep.subr.bf16.mxu0 %v720
    %934 = vmatpush1.bf16.msra.mxu0 %v719
    %935 = vmatprep.subr.bf16.mxu0 %v722
    %936 = vmatpush1.bf16.msra.mxu0 %v721
    %937 = vmatprep.subr.bf16.mxu0 %v724
    %938 = vmatpush1.bf16.msra.mxu0 %v723
    %939 = vmatprep.subr.bf16.mxu0 %v726
    %940 = vmatpush1.bf16.msra.mxu0 %v725
    %941 = vmatprep.subr.bf16.mxu0 %v728
    %942 = vmatpush1.bf16.msra.mxu0 %v727
    %943 = vmatprep.subr.bf16.mxu0 %v730
    %944 = vmatpush1.bf16.msra.mxu0 %v729
    %945 = vmatprep.subr.bf16.mxu0 %v732
    %946 = vmatpush1.bf16.msra.mxu0 %v731
    %947 = vmatprep.subr.bf16.mxu0 %v734
    %948 = vmatpush1.bf16.msra.mxu0 %v733
    %949 = vmatprep.subr.bf16.mxu0 %v736
    %950 = vmatpush1.bf16.msra.mxu0 %v735
    %951 = vmatprep.subr.bf16.mxu0 %v738
    %952 = vmatpush1.bf16.msra.mxu0 %v737
    %953 = vmatprep.subr.bf16.mxu0 %v740
    %954 = vmatpush1.bf16.msra.mxu0 %v739
    %955 = vmatprep.subr.bf16.mxu0 %v742
    %956 = vmatpush1.bf16.msra.mxu0 %v741
    %957 = vmatprep.mubr.bf16.mxu0 %v352
    %958 = vmatmul.mubr.bf16.gmra.mrb[0].mxu0 %v351
    %v959 = vpop.f32.mrb[0].mxu0
    %v960 = vadd.f32 %v917, %v959
    %v961 = vpop.f32.mrb[0].mxu0
    %v962 = vadd.f32 %v919, %v961
    %v963 = vpop.f32.mrb[0].mxu0
    %v964 = vadd.f32 %v921, %v963
    %v965 = vpop.f32.mrb[0].mxu0
    %v966 = vadd.f32 %v923, %v965
    %967 = vdwg.mxu0
    %v976 = vunpack.c.l.b16 %v91
    %v977 = vunpack.c.h.b16 %v91
    %v978 = vunpack.c.l.b16 %v92
    %v979 = vunpack.c.h.b16 %v92
    %v980 = vunpack.c.l.b16 %v93
    %v981 = vunpack.c.h.b16 %v93
    %v982 = vunpack.c.l.b16 %v94
    %v983 = vunpack.c.h.b16 %v94
    %v984 = vunpack.c.l.b16 %v95
    %v985 = vunpack.c.h.b16 %v95
    %v986 = vunpack.c.l.b16 %v96
    %v987 = vunpack.c.h.b16 %v96
    %v988 = vunpack.c.l.b16 %v97
    %v989 = vunpack.c.h.b16 %v97
    %v990 = vunpack.c.l.b16 %v98
    %v991 = vunpack.c.h.b16 %v98
    %v992 = vpack.c.b16 %v984, %v976
    %v993 = vpack.c.b16 %v985, %v977
    %v994 = vpack.c.b16 %v986, %v978
    %v995 = vpack.c.b16 %v987, %v979
    %v996 = vpack.c.b16 %v988, %v980
    %v997 = vpack.c.b16 %v989, %v981
    %v998 = vpack.c.b16 %v990, %v982
    %v999 = vpack.c.b16 %v991, %v983
    %v1136 = vunpack.c.l.b16 %v99
    %v1137 = vunpack.c.h.b16 %v99
    %v1138 = vunpack.c.l.b16 %v100
    %v1139 = vunpack.c.h.b16 %v100
    %v1140 = vunpack.c.l.b16 %v101
    %v1141 = vunpack.c.h.b16 %v101
    %v1142 = vunpack.c.l.b16 %v102
    %v1143 = vunpack.c.h.b16 %v102
    %v1144 = vunpack.c.l.b16 %v103
    %v1145 = vunpack.c.h.b16 %v103
    %v1146 = vunpack.c.l.b16 %v104
    %v1147 = vunpack.c.h.b16 %v104
    %v1148 = vunpack.c.l.b16 %v105
    %v1149 = vunpack.c.h.b16 %v105
    %v1150 = vunpack.c.l.b16 %v106
    %v1151 = vunpack.c.h.b16 %v106
    %v1152 = vunpack.c.l.b16 %v107
    %v1153 = vunpack.c.h.b16 %v107
    %v1154 = vunpack.c.l.b16 %v108
    %v1155 = vunpack.c.h.b16 %v108
    %v1156 = vunpack.c.l.b16 %v109
    %v1157 = vunpack.c.h.b16 %v109
    %v1158 = vunpack.c.l.b16 %v110
    %v1159 = vunpack.c.h.b16 %v110
    %v1160 = vunpack.c.l.b16 %v111
    %v1161 = vunpack.c.h.b16 %v111
    %v1162 = vunpack.c.l.b16 %v112
    %v1163 = vunpack.c.h.b16 %v112
    %v1164 = vunpack.c.l.b16 %v113
    %v1165 = vunpack.c.h.b16 %v113
    %v1166 = vunpack.c.l.b16 %v114
    %v1167 = vunpack.c.h.b16 %v114
    %v1168 = vunpack.c.l.b16 %v115
    %v1169 = vunpack.c.h.b16 %v115
    %v1170 = vunpack.c.l.b16 %v116
    %v1171 = vunpack.c.h.b16 %v116
    %v1172 = vunpack.c.l.b16 %v117
    %v1173 = vunpack.c.h.b16 %v117
    %v1174 = vunpack.c.l.b16 %v118
    %v1175 = vunpack.c.h.b16 %v118
    %v1176 = vunpack.c.l.b16 %v119
    %v1177 = vunpack.c.h.b16 %v119
    %v1178 = vunpack.c.l.b16 %v120
    %v1179 = vunpack.c.h.b16 %v120
    %v1180 = vunpack.c.l.b16 %v121
    %v1181 = vunpack.c.h.b16 %v121
    %v1182 = vunpack.c.l.b16 %v122
    %v1183 = vunpack.c.h.b16 %v122
    %v1184 = vunpack.c.l.b16 %v123
    %v1185 = vunpack.c.h.b16 %v123
    %v1186 = vunpack.c.l.b16 %v124
    %v1187 = vunpack.c.h.b16 %v124
    %v1188 = vunpack.c.l.b16 %v125
    %v1189 = vunpack.c.h.b16 %v125
    %v1190 = vunpack.c.l.b16 %v126
    %v1191 = vunpack.c.h.b16 %v126
    %v1192 = vunpack.c.l.b16 %v127
    %v1193 = vunpack.c.h.b16 %v127
    %v1194 = vunpack.c.l.b16 %v128
    %v1195 = vunpack.c.h.b16 %v128
    %v1196 = vunpack.c.l.b16 %v129
    %v1197 = vunpack.c.h.b16 %v129
    %v1198 = vunpack.c.l.b16 %v130
    %v1199 = vunpack.c.h.b16 %v130
    %v1200 = vunpack.c.l.b16 %v131
    %v1201 = vunpack.c.h.b16 %v131
    %v1202 = vunpack.c.l.b16 %v132
    %v1203 = vunpack.c.h.b16 %v132
    %v1204 = vunpack.c.l.b16 %v133
    %v1205 = vunpack.c.h.b16 %v133
    %v1206 = vunpack.c.l.b16 %v134
    %v1207 = vunpack.c.h.b16 %v134
    %v1208 = vunpack.c.l.b16 %v135
    %v1209 = vunpack.c.h.b16 %v135
    %v1210 = vunpack.c.l.b16 %v136
    %v1211 = vunpack.c.h.b16 %v136
    %v1212 = vunpack.c.l.b16 %v137
    %v1213 = vunpack.c.h.b16 %v137
    %v1214 = vunpack.c.l.b16 %v138
    %v1215 = vunpack.c.h.b16 %v138
    %v1216 = vunpack.c.l.b16 %v139
    %v1217 = vunpack.c.h.b16 %v139
    %v1218 = vunpack.c.l.b16 %v140
    %v1219 = vunpack.c.h.b16 %v140
    %v1220 = vunpack.c.l.b16 %v141
    %v1221 = vunpack.c.h.b16 %v141
    %v1222 = vunpack.c.l.b16 %v142
    %v1223 = vunpack.c.h.b16 %v142
    %v1224 = vunpack.c.l.b16 %v143
    %v1225 = vunpack.c.h.b16 %v143
    %v1226 = vunpack.c.l.b16 %v144
    %v1227 = vunpack.c.h.b16 %v144
    %v1228 = vunpack.c.l.b16 %v145
    %v1229 = vunpack.c.h.b16 %v145
    %v1230 = vunpack.c.l.b16 %v146
    %v1231 = vunpack.c.h.b16 %v146
    %v1232 = vunpack.c.l.b16 %v147
    %v1233 = vunpack.c.h.b16 %v147
    %v1234 = vunpack.c.l.b16 %v148
    %v1235 = vunpack.c.h.b16 %v148
    %v1236 = vunpack.c.l.b16 %v149
    %v1237 = vunpack.c.h.b16 %v149
    %v1238 = vunpack.c.l.b16 %v150
    %v1239 = vunpack.c.h.b16 %v150
    %v1240 = vunpack.c.l.b16 %v151
    %v1241 = vunpack.c.h.b16 %v151
    %v1242 = vunpack.c.l.b16 %v152
    %v1243 = vunpack.c.h.b16 %v152
    %v1244 = vunpack.c.l.b16 %v153
    %v1245 = vunpack.c.h.b16 %v153
    %v1246 = vunpack.c.l.b16 %v154
    %v1247 = vunpack.c.h.b16 %v154
    %v1248 = vunpack.c.l.b16 %v155
    %v1249 = vunpack.c.h.b16 %v155
    %v1250 = vunpack.c.l.b16 %v156
    %v1251 = vunpack.c.h.b16 %v156
    %v1252 = vunpack.c.l.b16 %v157
    %v1253 = vunpack.c.h.b16 %v157
    %v1254 = vunpack.c.l.b16 %v158
    %v1255 = vunpack.c.h.b16 %v158
    %v1256 = vunpack.c.l.b16 %v159
    %v1257 = vunpack.c.h.b16 %v159
    %v1258 = vunpack.c.l.b16 %v160
    %v1259 = vunpack.c.h.b16 %v160
    %v1260 = vunpack.c.l.b16 %v161
    %v1261 = vunpack.c.h.b16 %v161
    %v1262 = vunpack.c.l.b16 %v162
    %v1263 = vunpack.c.h.b16 %v162
    %v1264 = vunpack.c.l.b16 %v163
    %v1265 = vunpack.c.h.b16 %v163
    %v1266 = vunpack.c.l.b16 %v164
    %v1267 = vunpack.c.h.b16 %v164
    %v1268 = vunpack.c.l.b16 %v165
    %v1269 = vunpack.c.h.b16 %v165
    %v1270 = vunpack.c.l.b16 %v166
    %v1271 = vunpack.c.h.b16 %v166
    %v1272 = vunpack.c.l.b16 %v167
    %v1273 = vunpack.c.h.b16 %v167
    %v1274 = vunpack.c.l.b16 %v168
    %v1275 = vunpack.c.h.b16 %v168
    %v1276 = vunpack.c.l.b16 %v169
    %v1277 = vunpack.c.h.b16 %v169
    %v1278 = vunpack.c.l.b16 %v170
    %v1279 = vunpack.c.h.b16 %v170
    %v1280 = vunpack.c.l.b16 %v171
    %v1281 = vunpack.c.h.b16 %v171
    %v1282 = vunpack.c.l.b16 %v172
    %v1283 = vunpack.c.h.b16 %v172
    %v1284 = vunpack.c.l.b16 %v173
    %v1285 = vunpack.c.h.b16 %v173
    %v1286 = vunpack.c.l.b16 %v174
    %v1287 = vunpack.c.h.b16 %v174
    %v1288 = vunpack.c.l.b16 %v175
    %v1289 = vunpack.c.h.b16 %v175
    %v1290 = vunpack.c.l.b16 %v176
    %v1291 = vunpack.c.h.b16 %v176
    %v1292 = vunpack.c.l.b16 %v177
    %v1293 = vunpack.c.h.b16 %v177
    %v1294 = vunpack.c.l.b16 %v178
    %v1295 = vunpack.c.h.b16 %v178
    %v1296 = vunpack.c.l.b16 %v179
    %v1297 = vunpack.c.h.b16 %v179
    %v1298 = vunpack.c.l.b16 %v180
    %v1299 = vunpack.c.h.b16 %v180
    %v1300 = vunpack.c.l.b16 %v181
    %v1301 = vunpack.c.h.b16 %v181
    %v1302 = vunpack.c.l.b16 %v182
    %v1303 = vunpack.c.h.b16 %v182
    %v1304 = vunpack.c.l.b16 %v183
    %v1305 = vunpack.c.h.b16 %v183
    %v1306 = vunpack.c.l.b16 %v184
    %v1307 = vunpack.c.h.b16 %v184
    %v1308 = vunpack.c.l.b16 %v185
    %v1309 = vunpack.c.h.b16 %v185
    %v1310 = vunpack.c.l.b16 %v186
    %v1311 = vunpack.c.h.b16 %v186
    %v1312 = vunpack.c.l.b16 %v187
    %v1313 = vunpack.c.h.b16 %v187
    %v1314 = vunpack.c.l.b16 %v188
    %v1315 = vunpack.c.h.b16 %v188
    %v1316 = vunpack.c.l.b16 %v189
    %v1317 = vunpack.c.h.b16 %v189
    %v1318 = vunpack.c.l.b16 %v190
    %v1319 = vunpack.c.h.b16 %v190
    %v1320 = vunpack.c.l.b16 %v191
    %v1321 = vunpack.c.h.b16 %v191
    %v1322 = vunpack.c.l.b16 %v192
    %v1323 = vunpack.c.h.b16 %v192
    %v1324 = vunpack.c.l.b16 %v193
    %v1325 = vunpack.c.h.b16 %v193
    %v1326 = vunpack.c.l.b16 %v194
    %v1327 = vunpack.c.h.b16 %v194
    %v1328 = vunpack.c.l.b16 %v195
    %v1329 = vunpack.c.h.b16 %v195
    %v1330 = vunpack.c.l.b16 %v196
    %v1331 = vunpack.c.h.b16 %v196
    %v1332 = vunpack.c.l.b16 %v197
    %v1333 = vunpack.c.h.b16 %v197
    %v1334 = vunpack.c.l.b16 %v198
    %v1335 = vunpack.c.h.b16 %v198
    %v1336 = vunpack.c.l.b16 %v199
    %v1337 = vunpack.c.h.b16 %v199
    %v1338 = vunpack.c.l.b16 %v200
    %v1339 = vunpack.c.h.b16 %v200
    %v1340 = vunpack.c.l.b16 %v201
    %v1341 = vunpack.c.h.b16 %v201
    %v1342 = vunpack.c.l.b16 %v202
    %v1343 = vunpack.c.h.b16 %v202
    %v1344 = vunpack.c.l.b16 %v203
    %v1345 = vunpack.c.h.b16 %v203
    %v1346 = vunpack.c.l.b16 %v204
    %v1347 = vunpack.c.h.b16 %v204
    %v1348 = vunpack.c.l.b16 %v205
    %v1349 = vunpack.c.h.b16 %v205
    %v1350 = vunpack.c.l.b16 %v206
    %v1351 = vunpack.c.h.b16 %v206
    %v1352 = vunpack.c.l.b16 %v207
    %v1353 = vunpack.c.h.b16 %v207
    %v1354 = vunpack.c.l.b16 %v208
    %v1355 = vunpack.c.h.b16 %v208
    %v1356 = vunpack.c.l.b16 %v209
    %v1357 = vunpack.c.h.b16 %v209
    %v1358 = vunpack.c.l.b16 %v210
    %v1359 = vunpack.c.h.b16 %v210
    %v1360 = vunpack.c.l.b16 %v211
    %v1361 = vunpack.c.h.b16 %v211
    %v1362 = vunpack.c.l.b16 %v212
    %v1363 = vunpack.c.h.b16 %v212
    %v1364 = vunpack.c.l.b16 %v213
    %v1365 = vunpack.c.h.b16 %v213
    %v1366 = vunpack.c.l.b16 %v214
    %v1367 = vunpack.c.h.b16 %v214
    %v1368 = vunpack.c.l.b16 %v215
    %v1369 = vunpack.c.h.b16 %v215
    %v1370 = vunpack.c.l.b16 %v216
    %v1371 = vunpack.c.h.b16 %v216
    %v1372 = vunpack.c.l.b16 %v217
    %v1373 = vunpack.c.h.b16 %v217
    %v1374 = vunpack.c.l.b16 %v218
    %v1375 = vunpack.c.h.b16 %v218
    %v1376 = vunpack.c.l.b16 %v219
    %v1377 = vunpack.c.h.b16 %v219
    %v1378 = vunpack.c.l.b16 %v220
    %v1379 = vunpack.c.h.b16 %v220
    %v1380 = vunpack.c.l.b16 %v221
    %v1381 = vunpack.c.h.b16 %v221
    %v1382 = vunpack.c.l.b16 %v222
    %v1383 = vunpack.c.h.b16 %v222
    %v1384 = vunpack.c.l.b16 %v223
    %v1385 = vunpack.c.h.b16 %v223
    %v1386 = vunpack.c.l.b16 %v224
    %v1387 = vunpack.c.h.b16 %v224
    %v1388 = vunpack.c.l.b16 %v225
    %v1389 = vunpack.c.h.b16 %v225
    %v1390 = vunpack.c.l.b16 %v226
    %v1391 = vunpack.c.h.b16 %v226
    %v1392 = vpack.c.b16 %v1138, %v1136
    %v1393 = vpack.c.b16 %v1139, %v1137
    %v1394 = vpack.c.b16 %v1142, %v1140
    %v1395 = vpack.c.b16 %v1143, %v1141
    %v1396 = vpack.c.b16 %v1146, %v1144
    %v1397 = vpack.c.b16 %v1147, %v1145
    %v1398 = vpack.c.b16 %v1150, %v1148
    %v1399 = vpack.c.b16 %v1151, %v1149
    %v1400 = vpack.c.b16 %v1154, %v1152
    %v1401 = vpack.c.b16 %v1155, %v1153
    %v1402 = vpack.c.b16 %v1158, %v1156
    %v1403 = vpack.c.b16 %v1159, %v1157
    %v1404 = vpack.c.b16 %v1162, %v1160
    %v1405 = vpack.c.b16 %v1163, %v1161
    %v1406 = vpack.c.b16 %v1166, %v1164
    %v1407 = vpack.c.b16 %v1167, %v1165
    %v1408 = vpack.c.b16 %v1170, %v1168
    %v1409 = vpack.c.b16 %v1171, %v1169
    %v1410 = vpack.c.b16 %v1174, %v1172
    %v1411 = vpack.c.b16 %v1175, %v1173
    %v1412 = vpack.c.b16 %v1178, %v1176
    %v1413 = vpack.c.b16 %v1179, %v1177
    %v1414 = vpack.c.b16 %v1182, %v1180
    %v1415 = vpack.c.b16 %v1183, %v1181
    %v1416 = vpack.c.b16 %v1186, %v1184
    %v1417 = vpack.c.b16 %v1187, %v1185
    %v1418 = vpack.c.b16 %v1190, %v1188
    %v1419 = vpack.c.b16 %v1191, %v1189
    %v1420 = vpack.c.b16 %v1194, %v1192
    %v1421 = vpack.c.b16 %v1195, %v1193
    %v1422 = vpack.c.b16 %v1198, %v1196
    %v1423 = vpack.c.b16 %v1199, %v1197
    %v1424 = vpack.c.b16 %v1202, %v1200
    %v1425 = vpack.c.b16 %v1203, %v1201
    %v1426 = vpack.c.b16 %v1206, %v1204
    %v1427 = vpack.c.b16 %v1207, %v1205
    %v1428 = vpack.c.b16 %v1210, %v1208
    %v1429 = vpack.c.b16 %v1211, %v1209
    %v1430 = vpack.c.b16 %v1214, %v1212
    %v1431 = vpack.c.b16 %v1215, %v1213
    %v1432 = vpack.c.b16 %v1218, %v1216
    %v1433 = vpack.c.b16 %v1219, %v1217
    %v1434 = vpack.c.b16 %v1222, %v1220
    %v1435 = vpack.c.b16 %v1223, %v1221
    %v1436 = vpack.c.b16 %v1226, %v1224
    %v1437 = vpack.c.b16 %v1227, %v1225
    %v1438 = vpack.c.b16 %v1230, %v1228
    %v1439 = vpack.c.b16 %v1231, %v1229
    %v1440 = vpack.c.b16 %v1234, %v1232
    %v1441 = vpack.c.b16 %v1235, %v1233
    %v1442 = vpack.c.b16 %v1238, %v1236
    %v1443 = vpack.c.b16 %v1239, %v1237
    %v1444 = vpack.c.b16 %v1242, %v1240
    %v1445 = vpack.c.b16 %v1243, %v1241
    %v1446 = vpack.c.b16 %v1246, %v1244
    %v1447 = vpack.c.b16 %v1247, %v1245
    %v1448 = vpack.c.b16 %v1250, %v1248
    %v1449 = vpack.c.b16 %v1251, %v1249
    %v1450 = vpack.c.b16 %v1254, %v1252
    %v1451 = vpack.c.b16 %v1255, %v1253
    %v1452 = vpack.c.b16 %v1258, %v1256
    %v1453 = vpack.c.b16 %v1259, %v1257
    %v1454 = vpack.c.b16 %v1262, %v1260
    %v1455 = vpack.c.b16 %v1263, %v1261
    %v1456 = vpack.c.b16 %v1266, %v1264
    %v1457 = vpack.c.b16 %v1267, %v1265
    %v1458 = vpack.c.b16 %v1270, %v1268
    %v1459 = vpack.c.b16 %v1271, %v1269
    %v1460 = vpack.c.b16 %v1274, %v1272
    %v1461 = vpack.c.b16 %v1275, %v1273
    %v1462 = vpack.c.b16 %v1278, %v1276
    %v1463 = vpack.c.b16 %v1279, %v1277
    %v1464 = vpack.c.b16 %v1282, %v1280
    %v1465 = vpack.c.b16 %v1283, %v1281
    %v1466 = vpack.c.b16 %v1286, %v1284
    %v1467 = vpack.c.b16 %v1287, %v1285
    %v1468 = vpack.c.b16 %v1290, %v1288
    %v1469 = vpack.c.b16 %v1291, %v1289
    %v1470 = vpack.c.b16 %v1294, %v1292
    %v1471 = vpack.c.b16 %v1295, %v1293
    %v1472 = vpack.c.b16 %v1298, %v1296
    %v1473 = vpack.c.b16 %v1299, %v1297
    %v1474 = vpack.c.b16 %v1302, %v1300
    %v1475 = vpack.c.b16 %v1303, %v1301
    %v1476 = vpack.c.b16 %v1306, %v1304
    %v1477 = vpack.c.b16 %v1307, %v1305
    %v1478 = vpack.c.b16 %v1310, %v1308
    %v1479 = vpack.c.b16 %v1311, %v1309
    %v1480 = vpack.c.b16 %v1314, %v1312
    %v1481 = vpack.c.b16 %v1315, %v1313
    %v1482 = vpack.c.b16 %v1318, %v1316
    %v1483 = vpack.c.b16 %v1319, %v1317
    %v1484 = vpack.c.b16 %v1322, %v1320
    %v1485 = vpack.c.b16 %v1323, %v1321
    %v1486 = vpack.c.b16 %v1326, %v1324
    %v1487 = vpack.c.b16 %v1327, %v1325
    %v1488 = vpack.c.b16 %v1330, %v1328
    %v1489 = vpack.c.b16 %v1331, %v1329
    %v1490 = vpack.c.b16 %v1334, %v1332
    %v1491 = vpack.c.b16 %v1335, %v1333
    %v1492 = vpack.c.b16 %v1338, %v1336
    %v1493 = vpack.c.b16 %v1339, %v1337
    %v1494 = vpack.c.b16 %v1342, %v1340
    %v1495 = vpack.c.b16 %v1343, %v1341
    %v1496 = vpack.c.b16 %v1346, %v1344
    %v1497 = vpack.c.b16 %v1347, %v1345
    %v1498 = vpack.c.b16 %v1350, %v1348
    %v1499 = vpack.c.b16 %v1351, %v1349
    %v1500 = vpack.c.b16 %v1354, %v1352
    %v1501 = vpack.c.b16 %v1355, %v1353
    %v1502 = vpack.c.b16 %v1358, %v1356
    %v1503 = vpack.c.b16 %v1359, %v1357
    %v1504 = vpack.c.b16 %v1362, %v1360
    %v1505 = vpack.c.b16 %v1363, %v1361
    %v1506 = vpack.c.b16 %v1366, %v1364
    %v1507 = vpack.c.b16 %v1367, %v1365
    %v1508 = vpack.c.b16 %v1370, %v1368
    %v1509 = vpack.c.b16 %v1371, %v1369
    %v1510 = vpack.c.b16 %v1374, %v1372
    %v1511 = vpack.c.b16 %v1375, %v1373
    %v1512 = vpack.c.b16 %v1378, %v1376
    %v1513 = vpack.c.b16 %v1379, %v1377
    %v1514 = vpack.c.b16 %v1382, %v1380
    %v1515 = vpack.c.b16 %v1383, %v1381
    %v1516 = vpack.c.b16 %v1386, %v1384
    %v1517 = vpack.c.b16 %v1387, %v1385
    %v1518 = vpack.c.b16 %v1390, %v1388
    %v1519 = vpack.c.b16 %v1391, %v1389
    %1648 = vmatprep.subr.bf16.mxu0 %v1393
    %1649 = vmatpush1.bf16.msra.mxu0 %v1392
    %1650 = vmatprep.subr.bf16.mxu0 %v1395
    %1651 = vmatpush1.bf16.msra.mxu0 %v1394
    %1652 = vmatprep.subr.bf16.mxu0 %v1397
    %1653 = vmatpush1.bf16.msra.mxu0 %v1396
    %1654 = vmatprep.subr.bf16.mxu0 %v1399
    %1655 = vmatpush1.bf16.msra.mxu0 %v1398
    %1656 = vmatprep.subr.bf16.mxu0 %v1401
    %1657 = vmatpush1.bf16.msra.mxu0 %v1400
    %1658 = vmatprep.subr.bf16.mxu0 %v1403
    %1659 = vmatpush1.bf16.msra.mxu0 %v1402
    %1660 = vmatprep.subr.bf16.mxu0 %v1405
    %1661 = vmatpush1.bf16.msra.mxu0 %v1404
    %1662 = vmatprep.subr.bf16.mxu0 %v1407
    %1663 = vmatpush1.bf16.msra.mxu0 %v1406
    %1664 = vmatprep.subr.bf16.mxu0 %v1409
    %1665 = vmatpush1.bf16.msra.mxu0 %v1408
    %1666 = vmatprep.subr.bf16.mxu0 %v1411
    %1667 = vmatpush1.bf16.msra.mxu0 %v1410
    %1668 = vmatprep.subr.bf16.mxu0 %v1413
    %1669 = vmatpush1.bf16.msra.mxu0 %v1412
    %1670 = vmatprep.subr.bf16.mxu0 %v1415
    %1671 = vmatpush1.bf16.msra.mxu0 %v1414
    %1672 = vmatprep.subr.bf16.mxu0 %v1417
    %1673 = vmatpush1.bf16.msra.mxu0 %v1416
    %1674 = vmatprep.subr.bf16.mxu0 %v1419
    %1675 = vmatpush1.bf16.msra.mxu0 %v1418
    %1676 = vmatprep.subr.bf16.mxu0 %v1421
    %1677 = vmatpush1.bf16.msra.mxu0 %v1420
    %1678 = vmatprep.subr.bf16.mxu0 %v1423
    %1679 = vmatpush1.bf16.msra.mxu0 %v1422
    %1680 = vmatprep.mubr.bf16.mxu0 %v993
    %1681 = vmatmul.mubr.bf16.gmra.mrb[0].mxu0 %v992
    %v1682 = vpop.f32.mrb[0].mxu0
    %v1683 = vadd.f32 %v960, %v1682
    %v1684 = vpop.f32.mrb[0].mxu0
    %v1685 = vadd.f32 %v962, %v1684
    %v1686 = vpop.f32.mrb[0].mxu0
    %v1687 = vadd.f32 %v964, %v1686
    %v1688 = vpop.f32.mrb[0].mxu0
    %v1689 = vadd.f32 %v966, %v1688
    %1690 = vdwg.mxu0
    %1691 = vmatprep.subr.bf16.mxu0 %v1425
    %1692 = vmatpush1.bf16.msra.mxu0 %v1424
    %1693 = vmatprep.subr.bf16.mxu0 %v1427
    %1694 = vmatpush1.bf16.msra.mxu0 %v1426
    %1695 = vmatprep.subr.bf16.mxu0 %v1429
    %1696 = vmatpush1.bf16.msra.mxu0 %v1428
    %1697 = vmatprep.subr.bf16.mxu0 %v1431
    %1698 = vmatpush1.bf16.msra.mxu0 %v1430
    %1699 = vmatprep.subr.bf16.mxu0 %v1433
    %1700 = vmatpush1.bf16.msra.mxu0 %v1432
    %1701 = vmatprep.subr.bf16.mxu0 %v1435
    %1702 = vmatpush1.bf16.msra.mxu0 %v1434
    %1703 = vmatprep.subr.bf16.mxu0 %v1437
    %1704 = vmatpush1.bf16.msra.mxu0 %v1436
    %1705 = vmatprep.subr.bf16.mxu0 %v1439
    %1706 = vmatpush1.bf16.msra.mxu0 %v1438
    %1707 = vmatprep.subr.bf16.mxu0 %v1441
    %1708 = vmatpush1.bf16.msra.mxu0 %v1440
    %1709 = vmatprep.subr.bf16.mxu0 %v1443
    %1710 = vmatpush1.bf16.msra.mxu0 %v1442
    %1711 = vmatprep.subr.bf16.mxu0 %v1445
    %1712 = vmatpush1.bf16.msra.mxu0 %v1444
    %1713 = vmatprep.subr.bf16.mxu0 %v1447
    %1714 = vmatpush1.bf16.msra.mxu0 %v1446
    %1715 = vmatprep.subr.bf16.mxu0 %v1449
    %1716 = vmatpush1.bf16.msra.mxu0 %v1448
    %1717 = vmatprep.subr.bf16.mxu0 %v1451
    %1718 = vmatpush1.bf16.msra.mxu0 %v1450
    %1719 = vmatprep.subr.bf16.mxu0 %v1453
    %1720 = vmatpush1.bf16.msra.mxu0 %v1452
    %1721 = vmatprep.subr.bf16.mxu0 %v1455
    %1722 = vmatpush1.bf16.msra.mxu0 %v1454
    %1723 = vmatprep.mubr.bf16.mxu0 %v995
    %1724 = vmatmul.mubr.bf16.gmra.mrb[0].mxu0 %v994
    %v1725 = vpop.f32.mrb[0].mxu0
    %v1726 = vadd.f32 %v1683, %v1725
    %v1727 = vpop.f32.mrb[0].mxu0
    %v1728 = vadd.f32 %v1685, %v1727
    %v1729 = vpop.f32.mrb[0].mxu0
    %v1730 = vadd.f32 %v1687, %v1729
    %v1731 = vpop.f32.mrb[0].mxu0
    %v1732 = vadd.f32 %v1689, %v1731
    %1733 = vdwg.mxu0
    %1734 = vmatprep.subr.bf16.mxu0 %v1457
    %1735 = vmatpush1.bf16.msra.mxu0 %v1456
    %1736 = vmatprep.subr.bf16.mxu0 %v1459
    %1737 = vmatpush1.bf16.msra.mxu0 %v1458
    %1738 = vmatprep.subr.bf16.mxu0 %v1461
    %1739 = vmatpush1.bf16.msra.mxu0 %v1460
    %1740 = vmatprep.subr.bf16.mxu0 %v1463
    %1741 = vmatpush1.bf16.msra.mxu0 %v1462
    %1742 = vmatprep.subr.bf16.mxu0 %v1465
    %1743 = vmatpush1.bf16.msra.mxu0 %v1464
    %1744 = vmatprep.subr.bf16.mxu0 %v1467
    %1745 = vmatpush1.bf16.msra.mxu0 %v1466
    %1746 = vmatprep.subr.bf16.mxu0 %v1469
    %1747 = vmatpush1.bf16.msra.mxu0 %v1468
    %1748 = vmatprep.subr.bf16.mxu0 %v1471
    %1749 = vmatpush1.bf16.msra.mxu0 %v1470
    %1750 = vmatprep.subr.bf16.mxu0 %v1473
    %1751 = vmatpush1.bf16.msra.mxu0 %v1472
    %1752 = vmatprep.subr.bf16.mxu0 %v1475
    %1753 = vmatpush1.bf16.msra.mxu0 %v1474
    %1754 = vmatprep.subr.bf16.mxu0 %v1477
    %1755 = vmatpush1.bf16.msra.mxu0 %v1476
    %1756 = vmatprep.subr.bf16.mxu0 %v1479
    %1757 = vmatpush1.bf16.msra.mxu0 %v1478
    %1758 = vmatprep.subr.bf16.mxu0 %v1481
    %1759 = vmatpush1.bf16.msra.mxu0 %v1480
    %1760 = vmatprep.subr.bf16.mxu0 %v1483
    %1761 = vmatpush1.bf16.msra.mxu0 %v1482
    %1762 = vmatprep.subr.bf16.mxu0 %v1485
    %1763 = vmatpush1.bf16.msra.mxu0 %v1484
    %1764 = vmatprep.subr.bf16.mxu0 %v1487
    %1765 = vmatpush1.bf16.msra.mxu0 %v1486
    %1766 = vmatprep.mubr.bf16.mxu0 %v997
    %1767 = vmatmul.mubr.bf16.gmra.mrb[0].mxu0 %v996
    %v1768 = vpop.f32.mrb[0].mxu0
    %v1769 = vadd.f32 %v1726, %v1768
    %v1770 = vpop.f32.mrb[0].mxu0
    %v1771 = vadd.f32 %v1728, %v1770
    %v1772 = vpop.f32.mrb[0].mxu0
    %v1773 = vadd.f32 %v1730, %v1772
    %v1774 = vpop.f32.mrb[0].mxu0
    %v1775 = vadd.f32 %v1732, %v1774
    %1776 = vdwg.mxu0
    %1777 = vmatprep.subr.bf16.mxu0 %v1489
    %1778 = vmatpush1.bf16.msra.mxu0 %v1488
    %1779 = vmatprep.subr.bf16.mxu0 %v1491
    %1780 = vmatpush1.bf16.msra.mxu0 %v1490
    %1781 = vmatprep.subr.bf16.mxu0 %v1493
    %1782 = vmatpush1.bf16.msra.mxu0 %v1492
    %1783 = vmatprep.subr.bf16.mxu0 %v1495
    %1784 = vmatpush1.bf16.msra.mxu0 %v1494
    %1785 = vmatprep.subr.bf16.mxu0 %v1497
    %1786 = vmatpush1.bf16.msra.mxu0 %v1496
    %1787 = vmatprep.subr.bf16.mxu0 %v1499
    %1788 = vmatpush1.bf16.msra.mxu0 %v1498
    %1789 = vmatprep.subr.bf16.mxu0 %v1501
    %1790 = vmatpush1.bf16.msra.mxu0 %v1500
    %1791 = vmatprep.subr.bf16.mxu0 %v1503
    %1792 = vmatpush1.bf16.msra.mxu0 %v1502
    %1793 = vmatprep.subr.bf16.mxu0 %v1505
    %1794 = vmatpush1.bf16.msra.mxu0 %v1504
    %1795 = vmatprep.subr.bf16.mxu0 %v1507
    %1796 = vmatpush1.bf16.msra.mxu0 %v1506
    %1797 = vmatprep.subr.bf16.mxu0 %v1509
    %1798 = vmatpush1.bf16.msra.mxu0 %v1508
    %1799 = vmatprep.subr.bf16.mxu0 %v1511
    %1800 = vmatpush1.bf16.msra.mxu0 %v1510
    %1801 = vmatprep.subr.bf16.mxu0 %v1513
    %1802 = vmatpush1.bf16.msra.mxu0 %v1512
    %1803 = vmatprep.subr.bf16.mxu0 %v1515
    %1804 = vmatpush1.bf16.msra.mxu0 %v1514
    %1805 = vmatprep.subr.bf16.mxu0 %v1517
    %1806 = vmatpush1.bf16.msra.mxu0 %v1516
    %1807 = vmatprep.subr.bf16.mxu0 %v1519
    %1808 = vmatpush1.bf16.msra.mxu0 %v1518
    %1809 = vmatprep.mubr.bf16.mxu0 %v999
    %1810 = vmatmul.mubr.bf16.gmra.mrb[0].mxu0 %v998
    %v1811 = vpop.f32.mrb[0].mxu0
    %v1812 = vadd.f32 %v1769, %v1811
    %v1813 = vpop.f32.mrb[0].mxu0
    %v1814 = vadd.f32 %v1771, %v1813
    %v1815 = vpop.f32.mrb[0].mxu0
    %v1816 = vadd.f32 %v1773, %v1815
    %v1817 = vpop.f32.mrb[0].mxu0
    %v1818 = vadd.f32 %v1775, %v1817
    %1819 = vdwg.mxu0
    %v1820 = vld [vmem:[%s2] sm:$0xff]
    %v1821 = vld [vmem:[%s2 + $0x8] sm:$0xff]
    %1822 = vset.pattern.permute.xlu0 0
    %1823 = vperm.xlu0 %1822, %v1820
    %v1824 = vpop.permute.xlu0 %1823
    %1825 = vset.pattern.permute.xlu0 0
    %1826 = vperm.xlu0 %1825, %v1821
    %v1827 = vpop.permute.xlu0 %1826
    %1828 = vset.pattern.permute.xlu0 1
    %1829 = vperm.xlu0 %1828, %v1820
    %v1830 = vpop.permute.xlu0 %1829
    %1831 = vset.pattern.permute.xlu0 1
    %1832 = vperm.xlu0 %1831, %v1821
    %v1833 = vpop.permute.xlu0 %1832
    %vm1834 = vcmp.eq.s32.totalorder %v1824, 0
    %vm1835 = vcmp.eq.s32.totalorder %v1827, 0
    %v1836 = vld [vmem:[%s5] ss:$2 sm:$0x3]
    %v1838 = vlaneseq
    %v1839 = vshrl.u32 %v1838, 7
    %v1840 = vsub.s32 0, %v1839
    %v1841 = vrot.slane %v1836, %v1840
    %v1842 = vlaneseq
    %v1843 = vshrl.u32 %v1842, 7
    %v1844 = vsub.s32 1, %v1843
    %v1845 = vrot.slane %v1836, %v1844
    %v1848 = vsel %vm1834, %v1841, 0.0
    %v1849 = vsel %vm1834, %v1845, 0.0
    %v1850 = vsel %vm1835, %v1841, 0.0
    %v1851 = vsel %vm1835, %v1845, 0.0
    %vm1852 = vcmp.eq.s32.totalorder %v1824, 1
    %vm1853 = vcmp.eq.s32.totalorder %v1827, 1
    %s1854 = scalar_lea.vmem %s5, 1
    %v1855 = vld [vmem:[%s1854] ss:$2 sm:$0x3]
    %v1857 = vlaneseq
    %v1858 = vshrl.u32 %v1857, 7
    %v1859 = vsub.s32 0, %v1858
    %v1860 = vrot.slane %v1855, %v1859
    %v1861 = vlaneseq
    %v1862 = vshrl.u32 %v1861, 7
    %v1863 = vsub.s32 1, %v1862
    %v1864 = vrot.slane %v1855, %v1863
    %v1867 = vsel %vm1852, %v1860, %v1848
    %v1868 = vsel %vm1852, %v1864, %v1849
    %v1869 = vsel %vm1853, %v1860, %v1850
    %v1870 = vsel %vm1853, %v1864, %v1851
    %vm1871 = vcmp.eq.s32.totalorder %v1830, 0
    %vm1872 = vcmp.eq.s32.totalorder %v1833, 0
    %v1873 = vld [vmem:[%s6] ss:$8 sm:$0x3]
    %v1875 = vlaneseq
    %v1876 = vshrl.u32 %v1875, 7
    %v1877 = vsub.s32 0, %v1876
    %v1878 = vrot.slane %v1873, %v1877
    %v1879 = vlaneseq
    %v1880 = vshrl.u32 %v1879, 7
    %v1881 = vsub.s32 1, %v1880
    %v1882 = vrot.slane %v1873, %v1881
    %v1885 = vsel %vm1871, %v1878, 0.0
    %v1886 = vsel %vm1871, %v1882, 0.0
    %v1887 = vsel %vm1872, %v1878, 0.0
    %v1888 = vsel %vm1872, %v1882, 0.0
    %vm1889 = vcmp.eq.s32.totalorder %v1830, 1
    %vm1890 = vcmp.eq.s32.totalorder %v1833, 1
    %s1891 = scalar_lea.vmem %s6, 1
    %v1892 = vld [vmem:[%s1891] ss:$8 sm:$0x3]
    %v1894 = vlaneseq
    %v1895 = vshrl.u32 %v1894, 7
    %v1896 = vsub.s32 0, %v1895
    %v1897 = vrot.slane %v1892, %v1896
    %v1898 = vlaneseq
    %v1899 = vshrl.u32 %v1898, 7
    %v1900 = vsub.s32 1, %v1899
    %v1901 = vrot.slane %v1892, %v1900
    %v1904 = vsel %vm1889, %v1897, %v1885
    %v1905 = vsel %vm1889, %v1901, %v1886
    %v1906 = vsel %vm1890, %v1897, %v1887
    %v1907 = vsel %vm1890, %v1901, %v1888
    %vm1908 = vcmp.eq.s32.totalorder %v1830, 2
    %vm1909 = vcmp.eq.s32.totalorder %v1833, 2
    %s1910 = scalar_lea.vmem %s6, 2
    %v1911 = vld [vmem:[%s1910] ss:$8 sm:$0x3]
    %v1913 = vlaneseq
    %v1914 = vshrl.u32 %v1913, 7
    %v1915 = vsub.s32 0, %v1914
    %v1916 = vrot.slane %v1911, %v1915
    %v1917 = vlaneseq
    %v1918 = vshrl.u32 %v1917, 7
    %v1919 = vsub.s32 1, %v1918
    %v1920 = vrot.slane %v1911, %v1919
    %v1923 = vsel %vm1908, %v1916, %v1904
    %v1924 = vsel %vm1908, %v1920, %v1905
    %v1925 = vsel %vm1909, %v1916, %v1906
    %v1926 = vsel %vm1909, %v1920, %v1907
    %vm1927 = vcmp.eq.s32.totalorder %v1830, 3
    %vm1928 = vcmp.eq.s32.totalorder %v1833, 3
    %s1929 = scalar_lea.vmem %s6, 3
    %v1930 = vld [vmem:[%s1929] ss:$8 sm:$0x3]
    %v1932 = vlaneseq
    %v1933 = vshrl.u32 %v1932, 7
    %v1934 = vsub.s32 0, %v1933
    %v1935 = vrot.slane %v1930, %v1934
    %v1936 = vlaneseq
    %v1937 = vshrl.u32 %v1936, 7
    %v1938 = vsub.s32 1, %v1937
    %v1939 = vrot.slane %v1930, %v1938
    %v1942 = vsel %vm1927, %v1935, %v1923
    %v1943 = vsel %vm1927, %v1939, %v1924
    %v1944 = vsel %vm1928, %v1935, %v1925
    %v1945 = vsel %vm1928, %v1939, %v1926
    %vm1946 = vcmp.eq.s32.totalorder %v1830, 4
    %vm1947 = vcmp.eq.s32.totalorder %v1833, 4
    %s1948 = scalar_lea.vmem %s6, 4
    %v1949 = vld [vmem:[%s1948] ss:$8 sm:$0x3]
    %v1951 = vlaneseq
    %v1952 = vshrl.u32 %v1951, 7
    %v1953 = vsub.s32 0, %v1952
    %v1954 = vrot.slane %v1949, %v1953
    %v1955 = vlaneseq
    %v1956 = vshrl.u32 %v1955, 7
    %v1957 = vsub.s32 1, %v1956
    %v1958 = vrot.slane %v1949, %v1957
    %v1961 = vsel %vm1946, %v1954, %v1942
    %v1962 = vsel %vm1946, %v1958, %v1943
    %v1963 = vsel %vm1947, %v1954, %v1944
    %v1964 = vsel %vm1947, %v1958, %v1945
    %vm1965 = vcmp.eq.s32.totalorder %v1830, 5
    %vm1966 = vcmp.eq.s32.totalorder %v1833, 5
    %s1967 = scalar_lea.vmem %s6, 5
    %v1968 = vld [vmem:[%s1967] ss:$8 sm:$0x3]
    %v1970 = vlaneseq
    %v1971 = vshrl.u32 %v1970, 7
    %v1972 = vsub.s32 0, %v1971
    %v1973 = vrot.slane %v1968, %v1972
    %v1974 = vlaneseq
    %v1975 = vshrl.u32 %v1974, 7
    %v1976 = vsub.s32 1, %v1975
    %v1977 = vrot.slane %v1968, %v1976
    %v1980 = vsel %vm1965, %v1973, %v1961
    %v1981 = vsel %vm1965, %v1977, %v1962
    %v1982 = vsel %vm1966, %v1973, %v1963
    %v1983 = vsel %vm1966, %v1977, %v1964
    %vm1984 = vcmp.eq.s32.totalorder %v1830, 6
    %vm1985 = vcmp.eq.s32.totalorder %v1833, 6
    %s1986 = scalar_lea.vmem %s6, 6
    %v1987 = vld [vmem:[%s1986] ss:$8 sm:$0x3]
    %v1989 = vlaneseq
    %v1990 = vshrl.u32 %v1989, 7
    %v1991 = vsub.s32 0, %v1990
    %v1992 = vrot.slane %v1987, %v1991
    %v1993 = vlaneseq
    %v1994 = vshrl.u32 %v1993, 7
    %v1995 = vsub.s32 1, %v1994
    %v1996 = vrot.slane %v1987, %v1995
    %v1999 = vsel %vm1984, %v1992, %v1980
    %v2000 = vsel %vm1984, %v1996, %v1981
    %v2001 = vsel %vm1985, %v1992, %v1982
    %v2002 = vsel %vm1985, %v1996, %v1983
    %vm2003 = vcmp.eq.s32.totalorder %v1830, 7
    %vm2004 = vcmp.eq.s32.totalorder %v1833, 7
    %s2005 = scalar_lea.vmem %s6, 7
    %v2006 = vld [vmem:[%s2005] ss:$8 sm:$0x3]
    %v2008 = vlaneseq
    %v2009 = vshrl.u32 %v2008, 7
    %v2010 = vsub.s32 0, %v2009
    %v2011 = vrot.slane %v2006, %v2010
    %v2012 = vlaneseq
    %v2013 = vshrl.u32 %v2012, 7
    %v2014 = vsub.s32 1, %v2013
    %v2015 = vrot.slane %v2006, %v2014
    %v2018 = vsel %vm2003, %v2011, %v1999
    %v2019 = vsel %vm2003, %v2015, %v2000
    %v2020 = vsel %vm2004, %v2011, %v2001
    %v2021 = vsel %vm2004, %v2015, %v2002
    %vm2022 = vcmp.eq.s32.totalorder %v1830, 8
    %vm2023 = vcmp.eq.s32.totalorder %v1833, 8
    %s2024 = scalar_lea.vmem %s6, 16
    %v2025 = vld [vmem:[%s2024] ss:$8 sm:$0x3]
    %v2027 = vlaneseq
    %v2028 = vshrl.u32 %v2027, 7
    %v2029 = vsub.s32 0, %v2028
    %v2030 = vrot.slane %v2025, %v2029
    %v2031 = vlaneseq
    %v2032 = vshrl.u32 %v2031, 7
    %v2033 = vsub.s32 1, %v2032
    %v2034 = vrot.slane %v2025, %v2033
    %v2037 = vsel %vm2022, %v2030, %v2018
    %v2038 = vsel %vm2022, %v2034, %v2019
    %v2039 = vsel %vm2023, %v2030, %v2020
    %v2040 = vsel %vm2023, %v2034, %v2021
    %vm2041 = vcmp.eq.s32.totalorder %v1830, 9
    %vm2042 = vcmp.eq.s32.totalorder %v1833, 9
    %s2043 = scalar_lea.vmem %s6, 17
    %v2044 = vld [vmem:[%s2043] ss:$8 sm:$0x3]
    %v2046 = vlaneseq
    %v2047 = vshrl.u32 %v2046, 7
    %v2048 = vsub.s32 0, %v2047
    %v2049 = vrot.slane %v2044, %v2048
    %v2050 = vlaneseq
    %v2051 = vshrl.u32 %v2050, 7
    %v2052 = vsub.s32 1, %v2051
    %v2053 = vrot.slane %v2044, %v2052
    %v2056 = vsel %vm2041, %v2049, %v2037
    %v2057 = vsel %vm2041, %v2053, %v2038
    %v2058 = vsel %vm2042, %v2049, %v2039
    %v2059 = vsel %vm2042, %v2053, %v2040
    %vm2060 = vcmp.eq.s32.totalorder %v1830, 10
    %vm2061 = vcmp.eq.s32.totalorder %v1833, 10
    %s2062 = scalar_lea.vmem %s6, 18
    %v2063 = vld [vmem:[%s2062] ss:$8 sm:$0x3]
    %v2065 = vlaneseq
    %v2066 = vshrl.u32 %v2065, 7
    %v2067 = vsub.s32 0, %v2066
    %v2068 = vrot.slane %v2063, %v2067
    %v2069 = vlaneseq
    %v2070 = vshrl.u32 %v2069, 7
    %v2071 = vsub.s32 1, %v2070
    %v2072 = vrot.slane %v2063, %v2071
    %v2075 = vsel %vm2060, %v2068, %v2056
    %v2076 = vsel %vm2060, %v2072, %v2057
    %v2077 = vsel %vm2061, %v2068, %v2058
    %v2078 = vsel %vm2061, %v2072, %v2059
    %vm2079 = vcmp.eq.s32.totalorder %v1830, 11
    %vm2080 = vcmp.eq.s32.totalorder %v1833, 11
    %s2081 = scalar_lea.vmem %s6, 19
    %v2082 = vld [vmem:[%s2081] ss:$8 sm:$0x3]
    %v2084 = vlaneseq
    %v2085 = vshrl.u32 %v2084, 7
    %v2086 = vsub.s32 0, %v2085
    %v2087 = vrot.slane %v2082, %v2086
    %v2088 = vlaneseq
    %v2089 = vshrl.u32 %v2088, 7
    %v2090 = vsub.s32 1, %v2089
    %v2091 = vrot.slane %v2082, %v2090
    %v2094 = vsel %vm2079, %v2087, %v2075
    %v2095 = vsel %vm2079, %v2091, %v2076
    %v2096 = vsel %vm2080, %v2087, %v2077
    %v2097 = vsel %vm2080, %v2091, %v2078
    %vm2098 = vcmp.eq.s32.totalorder %v1830, 12
    %vm2099 = vcmp.eq.s32.totalorder %v1833, 12
    %s2100 = scalar_lea.vmem %s6, 20
    %v2101 = vld [vmem:[%s2100] ss:$8 sm:$0x3]
    %v2103 = vlaneseq
    %v2104 = vshrl.u32 %v2103, 7
    %v2105 = vsub.s32 0, %v2104
    %v2106 = vrot.slane %v2101, %v2105
    %v2107 = vlaneseq
    %v2108 = vshrl.u32 %v2107, 7
    %v2109 = vsub.s32 1, %v2108
    %v2110 = vrot.slane %v2101, %v2109
    %v2113 = vsel %vm2098, %v2106, %v2094
    %v2114 = vsel %vm2098, %v2110, %v2095
    %v2115 = vsel %vm2099, %v2106, %v2096
    %v2116 = vsel %vm2099, %v2110, %v2097
    %vm2117 = vcmp.eq.s32.totalorder %v1830, 13
    %vm2118 = vcmp.eq.s32.totalorder %v1833, 13
    %s2119 = scalar_lea.vmem %s6, 21
    %v2120 = vld [vmem:[%s2119] ss:$8 sm:$0x3]
    %v2122 = vlaneseq
    %v2123 = vshrl.u32 %v2122, 7
    %v2124 = vsub.s32 0, %v2123
    %v2125 = vrot.slane %v2120, %v2124
    %v2126 = vlaneseq
    %v2127 = vshrl.u32 %v2126, 7
    %v2128 = vsub.s32 1, %v2127
    %v2129 = vrot.slane %v2120, %v2128
    %v2132 = vsel %vm2117, %v2125, %v2113
    %v2133 = vsel %vm2117, %v2129, %v2114
    %v2134 = vsel %vm2118, %v2125, %v2115
    %v2135 = vsel %vm2118, %v2129, %v2116
    %v2136 = vadd.f32 %v1812, %v1867
    %v2137 = vadd.f32 %v1814, %v1868
    %v2138 = vadd.f32 %v1816, %v1869
    %v2139 = vadd.f32 %v1818, %v1870
    %v2140 = vadd.f32 %v2136, %v2132
    %v2141 = vadd.f32 %v2137, %v2133
    %v2142 = vadd.f32 %v2138, %v2134
    %v2143 = vadd.f32 %v2139, %v2135
    %v2144 = vld [vmem:[%s7] sm:$0x3]
    %v2146 = vlaneseq
    %v2147 = vshrl.u32 %v2146, 7
    %v2148 = vsub.s32 0, %v2147
    %v2149 = vrot.slane %v2144, %v2148
    %v2150 = vlaneseq
    %v2151 = vshrl.u32 %v2150, 7
    %v2152 = vsub.s32 1, %v2151
    %v2153 = vrot.slane %v2144, %v2152
    %v2156 = vadd.f32 %v2140, %v2149
    %v2157 = vadd.f32 %v2141, %v2153
    %v2158 = vadd.f32 %v2142, %v2149
    %v2159 = vadd.f32 %v2143, %v2153
    %v2160 = vmax.f32 %v2156, 0.0
    %v2161 = vmax.f32 %v2157, 0.0
    %v2162 = vmax.f32 %v2158, 0.0
    %v2163 = vmax.f32 %v2159, 0.0
    %v2164 = vld [vmem:[%s8] sm:$0x3]
    %v2166 = vlaneseq
    %v2167 = vshrl.u32 %v2166, 7
    %v2168 = vsub.s32 0, %v2167
    %v2169 = vrot.slane %v2164, %v2168
    %v2170 = vlaneseq
    %v2171 = vshrl.u32 %v2170, 7
    %v2172 = vsub.s32 1, %v2171
    %v2173 = vrot.slane %v2164, %v2172
    %v2176 = vmul.f32 %v2160, %v2169
    %v2177 = vmul.f32 %v2161, %v2173
    %v2178 = vmul.f32 %v2162, %v2169
    %v2179 = vmul.f32 %v2163, %v2173
    %v2180 = vadd.f32 %v2176, %v2177
    %2181 = vadd.xlane.f32.xlu0 %v2180
    %v2182 = vpop.xlane.xlu0 %2181
    %v2183 = vadd.f32 %v2178, %v2179
    %2184 = vadd.xlane.f32.xlu0 %v2183
    %v2185 = vpop.xlane.xlu0 %2184
    %s2186 = sld [smem:[#allocation2]]
    %v2187 = vstv %s2186
    %v2188 = vadd.f32 %v2182, %v2187
    %v2189 = vadd.f32 %v2185, %v2187
    %vm2190 = vcmask 7168
    %2191 = vst.msk [vmem:[%s10] sm:$0xff] %vm2190, %v2188
    %2192 = vst.msk [vmem:[%s10 + $0x8] sm:$0xff] %vm2190, %v2189
    // Predicated region
    $region58: #{tpu_custom_call.1} parent=1 // pred_check
      _
    $region59: #{tpu_custom_call.1} parent=1 // pred_check_branch
      %2194 = sbr.rel (0) target = $region61
    $region60: #{tpu_custom_call.1} parent=1 // pred_region
      _
    $region61: #{tpu_custom_call.1} parent=1 // pred_fallthru
      _
    // Predicated region
    $region62: #{tpu_custom_call.1} parent=1 // pred_check
      _
    $region63: #{tpu_custom_call.1} parent=1 // pred_check_branch
      %2196 = sbr.rel (0) target = $region65
    $region64: #{tpu_custom_call.1} parent=1 // pred_region
      _
    $region65: #{tpu_custom_call.1} parent=1 // pred_fallthru
      _
    %2197 = vsyncpa [#allocation4], 1
    %2198 = vsyncpa [#allocation6], 1
    %2199 = vsyncpa [#allocation9], 1

</llo_original>
